<compile_context>
chip_gen: v7x
topology: tpu7x:2x2x1
jax: 0.10.0
libtpu: 0.0.40
codegen_flags: <defaults>
</compile_context>

<pallas_src>
import functools

import numpy as np
import jax
import jax.numpy as jnp
from jax.experimental import pallas as pl
from jax.experimental.pallas import tpu as pltpu

# ------------------------- model dimensions (small) -------------------------
VOCAB = 32
EMBED = 64          # conv in_channels (module default embed_dim=64)
CONV_OUT = 64       # hard-coded in the module
KSIZE = 3
HIDDEN = 128        # module default hidden_size
BATCH = 2
SEQ = 8             # even, so MaxPool1d(2) gives SEQ//2 steps for the LSTM


# ----------------------------- fused Pallas kernel --------------------------
def _fused_kernel(x_ref, wconv_ref, bconv_ref, wih_ref, whh_ref, blstm_ref,
                  wfc_ref, bfc_ref, logits_ref, hn_ref, cn_ref,
                  *, batch, seq):
    """conv1d(k=3,p=1) -> relu -> maxpool(2) -> LSTM -> fc, all in VMEM.

    x:     (B*T, E)  f32   embedded tokens, batch-major flat rows (b*T + t)
    wconv: (3E, C)   bf16  im2col conv weight, tap order [x_{t-1} | x_t | x_{t+1}]
    bconv: (1, C)    f32
    wih:   (C, 4H)   bf16   whh: (H, 4H) bf16   blstm: (1, 4H) f32
    wfc:   (H, V)    bf16   bfc: (1, V)  f32
    outs:  logits (B, V) f32, h_n (B, H) f32, c_n (B, H) f32
    """
    B, T = batch, seq
    Tp = T // 2
    BT = B * T
    H = hn_ref.shape[1]

    x = x_ref[...]                                            # (BT, E) f32

    # Batch-aware +/-1 time shifts expressed as 0/1 selection matmuls.  This
    # folds the Conv1d padding=1 zero boundary into the kernel (no wrapper
    # pad, no HBM copy of a padded tensor) with only well-supported ops.
    row = jax.lax.broadcasted_iota(jnp.int32, (BT, BT), 0)
    col = jax.lax.broadcasted_iota(jnp.int32, (BT, BT), 1)
    shift_prev = jnp.where((col == row - 1) & ((row % T) != 0), 1.0, 0.0)
    shift_next = jnp.where((col == row + 1) & ((row % T) != T - 1), 1.0, 0.0)
    x_prev = jnp.dot(shift_prev, x, preferred_element_type=jnp.float32)
    x_next = jnp.dot(shift_next, x, preferred_element_type=jnp.float32)

    # Conv1d(k=3, pad=1) + bias + ReLU for the whole batch as ONE im2col
    # matmul: (B*T, 3E) x (3E, C), bf16 operands, f32 accumulation.
    slab = jnp.concatenate([x_prev, x, x_next], axis=1).astype(wconv_ref.dtype)
    y = jnp.dot(slab, wconv_ref[...], preferred_element_type=jnp.float32)
    y = jnp.maximum(y + bconv_ref[...], 0.0)                  # (BT, C) f32

    # MaxPool1d(2), vectorized and without compaction: row b*T+2t now holds
    # max(y[2t], y[2t+1]); odd-t rows hold junk and are never read again.
    pooled = jnp.maximum(
        y, jnp.dot(shift_next, y, preferred_element_type=jnp.float32))

    # LSTM input projections for ALL timesteps in one (B*T, C)x(C, 4H) matmul,
    # bias added once (hoisted out of the recurrence).
    xg = jnp.dot(pooled.astype(wih_ref.dtype), wih_ref[...],
                 preferred_element_type=jnp.float32) + blstm_ref[...]

    whh = whh_ref[...]                                        # (H, 4H) bf16
    brow = jax.lax.broadcasted_iota(jnp.int32, (B, 4 * H), 0)
    h = jnp.zeros((B, H), jnp.float32)
    c_state = jnp.zeros((B, H), jnp.float32)
    for t in range(Tp):                                       # short static recurrence
        # Gather this step's precomputed input gates (rows b*T + 2t) into a
        # (B, 4H) tile via sublane-broadcast selects (no unaligned concats).
        x_t = xg[2 * t:2 * t + 1, :]
        for bi in range(1, B):
            x_t = jnp.where(brow >= bi,
                            xg[bi * T + 2 * t:bi * T + 2 * t + 1, :], x_t)
        gates = x_t + jnp.dot(h.astype(whh.dtype), whh,
                              preferred_element_type=jnp.float32)
        i_g = jax.nn.sigmoid(gates[:, 0:H])                   # PyTorch order: i,f,g,o
        f_g = jax.nn.sigmoid(gates[:, H:2 * H])
        g_g = jnp.tanh(gates[:, 2 * H:3 * H])
        o_g = jax.nn.sigmoid(gates[:, 3 * H:4 * H])
        c_state = f_g * c_state + i_g * g_g                   # f32 cell state
        h = o_g * jnp.tanh(c_state)

    hn_ref[...] = h
    cn_ref[...] = c_state
    logits_ref[...] = (jnp.dot(h.astype(wfc_ref.dtype), wfc_ref[...],
                               preferred_element_type=jnp.float32)
                       + bfc_ref[...])


# ------------------------------ wrapper --------------------------------------
@jax.jit
def cnn_lstm_forward(tokens, params):
    B, T = tokens.shape
    E = params["emb"].shape[1]
    H = params["w_hh_t"].shape[0]
    V = params["b_fc"].shape[1]
    # Embedding lookup is a data-dependent gather -> plain-JAX glue feeding
    # the fused kernel (flattened to lane-dense (B*T, E)).
    x = params["emb"][tokens].reshape(B * T, E)

    vmem = pl.BlockSpec(memory_space=pltpu.MemorySpace.VMEM)
    kernel = functools.partial(_fused_kernel, batch=B, seq=T)
    logits, hn, cn = pl.pallas_call(
        kernel,
        out_shape=(jax.ShapeDtypeStruct((B, V), jnp.float32),
                   jax.ShapeDtypeStruct((B, H), jnp.float32),
                   jax.ShapeDtypeStruct((B, H), jnp.float32)),
        in_specs=[vmem] * 8,
        out_specs=(vmem, vmem, vmem),
    )(x, params["w_conv"], params["b_conv"], params["w_ih_t"],
      params["w_hh_t"], params["b_lstm"], params["w_fc_t"], params["b_fc"])
    # PyTorch returns hidden as (num_layers, B, H) tensors.
    return logits, (hn[None], cn[None])


# --------------------------- pure-JAX reference -------------------------------
def ref_forward(tokens, p):
    """f32 reference of the PyTorch forward using the same (bf16) weight values."""
    x = p["emb"][tokens].astype(jnp.float32)                  # (B, T, E)
    B, T, E = x.shape
    w = p["w_conv"].astype(jnp.float32).reshape(KSIZE, E, -1) # (K, E, C)
    xpad = jnp.pad(x, ((0, 0), (1, 1), (0, 0)))
    y = sum(jnp.einsum("bte,ec->btc", xpad[:, k:k + T, :], w[k])
            for k in range(KSIZE))
    y = jnp.maximum(y + p["b_conv"][None], 0.0)
    y = jnp.maximum(y[:, 0::2, :], y[:, 1::2, :])             # MaxPool1d(2)
    wih = p["w_ih_t"].astype(jnp.float32)
    whh = p["w_hh_t"].astype(jnp.float32)
    b = p["b_lstm"]
    H = whh.shape[0]
    h = jnp.zeros((B, H), jnp.float32)
    c = jnp.zeros((B, H), jnp.float32)
    for t in range(y.shape[1]):
        gates = y[:, t, :] @ wih + h @ whh + b
        i_g = jax.nn.sigmoid(gates[:, 0:H])
        f_g = jax.nn.sigmoid(gates[:, H:2 * H])
        g_g = jnp.tanh(gates[:, 2 * H:3 * H])
        o_g = jax.nn.sigmoid(gates[:, 3 * H:4 * H])
        c = f_g * c + i_g * g_g
        h = o_g * jnp.tanh(c)
    logits = h @ p["w_fc_t"].astype(jnp.float32) + p["b_fc"]
    return logits, (h[None], c[None])


# --------------------------------- main ---------------------------------------
if __name__ == "__main__":
    key = jax.random.PRNGKey(0)
    ks = jax.random.split(key, 9)

    # Deterministic synthetic parameters (PyTorch shapes noted in comments).
    emb = jax.random.normal(ks[0], (VOCAB, EMBED), jnp.float32) * 0.1         # (V, E)
    w_conv_pt = jax.random.normal(ks[1], (CONV_OUT, EMBED, KSIZE),
                                  jnp.float32) * 0.1                          # (C_out, C_in, K)
    b_conv = jax.random.normal(ks[2], (CONV_OUT,), jnp.float32) * 0.1
    w_ih = jax.random.normal(ks[3], (4 * HIDDEN, CONV_OUT), jnp.float32) * 0.1  # (4H, 64)
    w_hh = jax.random.normal(ks[4], (4 * HIDDEN, HIDDEN), jnp.float32) * 0.1    # (4H, H)
    b_ih = jax.random.normal(ks[5], (4 * HIDDEN,), jnp.float32) * 0.1
    b_hh = jax.random.normal(ks[6], (4 * HIDDEN,), jnp.float32) * 0.1
    w_fc = jax.random.normal(ks[7], (VOCAB, HIDDEN), jnp.float32) * 0.1         # (V, H)
    b_fc = jax.random.normal(ks[8], (VOCAB,), jnp.float32) * 0.1

    # Device-side layouts: im2col conv weight (K*E, C); LSTM/fc weights
    # pre-transposed; matmul weights in bf16 (halves weight DMA), biases f32.
    w_conv_kec = jnp.transpose(w_conv_pt, (2, 1, 0))          # (K, E, C); tap k hits x_{t+k-1}
    params = {
        "emb": emb,                                                            # (V, E) f32
        "w_conv": w_conv_kec.reshape(KSIZE * EMBED, CONV_OUT).astype(jnp.bfloat16),
        "b_conv": b_conv.reshape(1, CONV_OUT),
        "w_ih_t": w_ih.T.astype(jnp.bfloat16),                                 # (64, 4H)
        "w_hh_t": w_hh.T.astype(jnp.bfloat16),                                 # (H, 4H)
        "b_lstm": (b_ih + b_hh).reshape(1, 4 * HIDDEN),
        "w_fc_t": w_fc.T.astype(jnp.bfloat16),                                 # (H, V)
        "b_fc": b_fc.reshape(1, VOCAB),
    }

    tokens = jax.random.randint(jax.random.PRNGKey(42), (BATCH, SEQ), 0, VOCAB,
                                dtype=jnp.int32)

    logits, (h_n, c_n) = cnn_lstm_forward(tokens, params)
    jax.block_until_ready((logits, h_n, c_n))

    ref_logits, (ref_h, ref_c) = ref_forward(tokens, params)
    np.testing.assert_allclose(np.asarray(logits), np.asarray(ref_logits),
                               rtol=1e-2, atol=1e-2)
    np.testing.assert_allclose(np.asarray(h_n), np.asarray(ref_h),
                               rtol=1e-2, atol=1e-2)
    np.testing.assert_allclose(np.asarray(c_n), np.asarray(ref_c),
                               rtol=1e-2, atol=1e-2)

    assert logits.shape == (BATCH, VOCAB)
    assert h_n.shape == (1, BATCH, HIDDEN) and c_n.shape == (1, BATCH, HIDDEN)
    print("KERNEL_OK")
</pallas_src>

<mosaic_0001>
module attributes {stable_mosaic.version = 11 : i64} {
  func.func @_fused_kernel(%arg0: memref<16x64xf32, #tpu.memory_space<vmem>>, %arg1: memref<192x64xbf16, #tpu.memory_space<vmem>>, %arg2: memref<1x64xf32, #tpu.memory_space<vmem>>, %arg3: memref<64x512xbf16, #tpu.memory_space<vmem>>, %arg4: memref<128x512xbf16, #tpu.memory_space<vmem>>, %arg5: memref<1x512xf32, #tpu.memory_space<vmem>>, %arg6: memref<128x32xbf16, #tpu.memory_space<vmem>>, %arg7: memref<1x32xf32, #tpu.memory_space<vmem>>, %arg8: memref<2x32xf32, #tpu.memory_space<vmem>>, %arg9: memref<2x128xf32, #tpu.memory_space<vmem>>, %arg10: memref<2x128xf32, #tpu.memory_space<vmem>>) attributes {dimension_semantics = [], scalar_prefetch = 0 : i64, scratch_operands = 0 : i64, tpu.core_type = #tpu.core_type<tc>} {
    %c0 = arith.constant 0 : index
    %c0_0 = arith.constant 0 : index
    %0 = vector.load %arg0[%c0, %c0_0] : memref<16x64xf32, #tpu.memory_space<vmem>>, vector<16x64xf32>
    %1 = tpu.iota {dimensions = array<i32: 0>} : vector<16x16xi32>
    %2 = tpu.iota {dimensions = array<i32: 1>} : vector<16x16xi32>
    %c1_i32 = arith.constant 1 : i32
    %3 = vector.broadcast %c1_i32 : i32 to vector<16x16xi32>
    %4 = arith.subi %1, %3 : vector<16x16xi32>
    %5 = arith.cmpi eq, %2, %4 : vector<16x16xi32>
    %c8_i32 = arith.constant 8 : i32
    %c0_i32 = arith.constant 0 : i32
    %6 = arith.cmpi eq, %c8_i32, %c0_i32 : i32
    %c1_i32_1 = arith.constant 1 : i32
    %7 = arith.select %6, %c1_i32_1, %c8_i32 : i32
    %8 = vector.broadcast %7 : i32 to vector<16x16xi32>
    %9 = arith.remsi %1, %8 : vector<16x16xi32>
    %c0_i32_2 = arith.constant 0 : i32
    %10 = vector.broadcast %c0_i32_2 : i32 to vector<16x16xi32>
    %11 = arith.cmpi ne, %9, %10 : vector<16x16xi32>
    %c0_i32_3 = arith.constant 0 : i32
    %12 = vector.broadcast %c0_i32_3 : i32 to vector<16x16xi32>
    %13 = arith.cmpi slt, %9, %12 : vector<16x16xi32>
    %c0_i32_4 = arith.constant 0 : i32
    %14 = arith.cmpi slt, %7, %c0_i32_4 : i32
    %15 = vector.broadcast %14 : i1 to vector<16x16xi1>
    %16 = vector.broadcast %15 : vector<16x16xi1> to vector<16x16xi1>
    %17 = arith.xori %13, %16 : vector<16x16xi1>
    %18 = arith.andi %17, %11 : vector<16x16xi1>
    %19 = vector.broadcast %7 : i32 to vector<16x16xi32>
    %20 = arith.addi %9, %19 : vector<16x16xi32>
    %21 = arith.select %18, %20, %9 : vector<16x16xi1>, vector<16x16xi32>
    %c0_i32_5 = arith.constant 0 : i32
    %22 = vector.broadcast %c0_i32_5 : i32 to vector<16x16xi32>
    %23 = arith.cmpi ne, %21, %22 : vector<16x16xi32>
    %24 = arith.andi %5, %23 : vector<16x16xi1>
    %cst = arith.constant 1.000000e+00 : f32
    %cst_6 = arith.constant 0.000000e+00 : f32
    %25 = vector.broadcast %cst : f32 to vector<16x16xf32>
    %26 = vector.broadcast %cst_6 : f32 to vector<16x16xf32>
    %27 = arith.select %24, %25, %26 : vector<16x16xi1>, vector<16x16xf32>
    %c1_i32_7 = arith.constant 1 : i32
    %28 = vector.broadcast %c1_i32_7 : i32 to vector<16x16xi32>
    %29 = arith.addi %1, %28 : vector<16x16xi32>
    %30 = arith.cmpi eq, %2, %29 : vector<16x16xi32>
    %c8_i32_8 = arith.constant 8 : i32
    %c0_i32_9 = arith.constant 0 : i32
    %31 = arith.cmpi eq, %c8_i32_8, %c0_i32_9 : i32
    %c1_i32_10 = arith.constant 1 : i32
    %32 = arith.select %31, %c1_i32_10, %c8_i32_8 : i32
    %33 = vector.broadcast %32 : i32 to vector<16x16xi32>
    %34 = arith.remsi %1, %33 : vector<16x16xi32>
    %c0_i32_11 = arith.constant 0 : i32
    %35 = vector.broadcast %c0_i32_11 : i32 to vector<16x16xi32>
    %36 = arith.cmpi ne, %34, %35 : vector<16x16xi32>
    %c0_i32_12 = arith.constant 0 : i32
    %37 = vector.broadcast %c0_i32_12 : i32 to vector<16x16xi32>
    %38 = arith.cmpi slt, %34, %37 : vector<16x16xi32>
    %c0_i32_13 = arith.constant 0 : i32
    %39 = arith.cmpi slt, %32, %c0_i32_13 : i32
    %40 = vector.broadcast %39 : i1 to vector<16x16xi1>
    %41 = vector.broadcast %40 : vector<16x16xi1> to vector<16x16xi1>
    %42 = arith.xori %38, %41 : vector<16x16xi1>
    %43 = arith.andi %42, %36 : vector<16x16xi1>
    %44 = vector.broadcast %32 : i32 to vector<16x16xi32>
    %45 = arith.addi %34, %44 : vector<16x16xi32>
    %46 = arith.select %43, %45, %34 : vector<16x16xi1>, vector<16x16xi32>
    %c7_i32 = arith.constant 7 : i32
    %47 = vector.broadcast %c7_i32 : i32 to vector<16x16xi32>
    %48 = arith.cmpi ne, %46, %47 : vector<16x16xi32>
    %49 = arith.andi %30, %48 : vector<16x16xi1>
    %cst_14 = arith.constant 1.000000e+00 : f32
    %cst_15 = arith.constant 0.000000e+00 : f32
    %50 = vector.broadcast %cst_14 : f32 to vector<16x16xf32>
    %51 = vector.broadcast %cst_15 : f32 to vector<16x16xf32>
    %52 = arith.select %49, %50, %51 : vector<16x16xi1>, vector<16x16xf32>
    %cst_16 = arith.constant dense<0.000000e+00> : vector<16x64xf32>
    %53 = tpu.matmul %27, %0, %cst_16 {dimension_numbers = #tpu.dot_dimension_numbers<[1], [0], [0], [1], [0, 0, 1, 1], [], []>} : vector<16x16xf32>, vector<16x64xf32>, vector<16x64xf32> -> vector<16x64xf32>
    %cst_17 = arith.constant dense<0.000000e+00> : vector<16x64xf32>
    %54 = tpu.matmul %52, %0, %cst_17 {dimension_numbers = #tpu.dot_dimension_numbers<[1], [0], [0], [1], [0, 0, 1, 1], [], []>} : vector<16x16xf32>, vector<16x64xf32>, vector<16x64xf32> -> vector<16x64xf32>
    %55 = tpu.concatenate %53, %0, %54 in 1 : vector<16x64xf32>, vector<16x64xf32>, vector<16x64xf32> -> vector<16x192xf32>
    %56 = arith.truncf %55 : vector<16x192xf32> to vector<16x192xbf16>
    %c0_18 = arith.constant 0 : index
    %c0_19 = arith.constant 0 : index
    %57 = vector.load %arg1[%c0_18, %c0_19] : memref<192x64xbf16, #tpu.memory_space<vmem>>, vector<192x64xbf16>
    %cst_20 = arith.constant dense<0.000000e+00> : vector<16x64xf32>
    %58 = tpu.matmul %56, %57, %cst_20 {dimension_numbers = #tpu.dot_dimension_numbers<[1], [0], [0], [1], [0, 0, 1, 1], [], []>} : vector<16x192xbf16>, vector<192x64xbf16>, vector<16x64xf32> -> vector<16x64xf32>
    %c0_21 = arith.constant 0 : index
    %c0_22 = arith.constant 0 : index
    %59 = vector.load %arg2[%c0_21, %c0_22] : memref<1x64xf32, #tpu.memory_space<vmem>>, vector<1x64xf32>
    %60 = vector.broadcast %59 : vector<1x64xf32> to vector<16x64xf32>
    %61 = arith.addf %58, %60 : vector<16x64xf32>
    %cst_23 = arith.constant 0.000000e+00 : f32
    %62 = vector.broadcast %cst_23 : f32 to vector<16x64xf32>
    %63 = arith.maximumf %61, %62 : vector<16x64xf32>
    %cst_24 = arith.constant dense<0.000000e+00> : vector<16x64xf32>
    %64 = tpu.matmul %52, %63, %cst_24 {dimension_numbers = #tpu.dot_dimension_numbers<[1], [0], [0], [1], [0, 0, 1, 1], [], []>} : vector<16x16xf32>, vector<16x64xf32>, vector<16x64xf32> -> vector<16x64xf32>
    %65 = arith.maximumf %63, %64 : vector<16x64xf32>
    %66 = arith.truncf %65 : vector<16x64xf32> to vector<16x64xbf16>
    %c0_25 = arith.constant 0 : index
    %c0_26 = arith.constant 0 : index
    %67 = vector.load %arg3[%c0_25, %c0_26] : memref<64x512xbf16, #tpu.memory_space<vmem>>, vector<64x512xbf16>
    %cst_27 = arith.constant dense<0.000000e+00> : vector<16x512xf32>
    %68 = tpu.matmul %66, %67, %cst_27 {dimension_numbers = #tpu.dot_dimension_numbers<[1], [0], [0], [1], [0, 0, 1, 1], [], []>} : vector<16x64xbf16>, vector<64x512xbf16>, vector<16x512xf32> -> vector<16x512xf32>
    %c0_28 = arith.constant 0 : index
    %c0_29 = arith.constant 0 : index
    %69 = vector.load %arg5[%c0_28, %c0_29] : memref<1x512xf32, #tpu.memory_space<vmem>>, vector<1x512xf32>
    %70 = vector.broadcast %69 : vector<1x512xf32> to vector<16x512xf32>
    %71 = arith.addf %68, %70 : vector<16x512xf32>
    %c0_30 = arith.constant 0 : index
    %c0_31 = arith.constant 0 : index
    %72 = vector.load %arg4[%c0_30, %c0_31] : memref<128x512xbf16, #tpu.memory_space<vmem>>, vector<128x512xbf16>
    %73 = tpu.iota {dimensions = array<i32: 0>} : vector<2x512xi32>
    %cst_32 = arith.constant 0.000000e+00 : f32
    %74 = vector.broadcast %cst_32 : f32 to vector<2x128xf32>
    %cst_33 = arith.constant 0.000000e+00 : f32
    %75 = vector.broadcast %cst_33 : f32 to vector<2x128xf32>
    %76 = vector.extract_strided_slice %71 {offsets = [0, 0], sizes = [1, 512], strides = [1, 1]} : vector<16x512xf32> to vector<1x512xf32>
    %c1_i32_34 = arith.constant 1 : i32
    %77 = vector.broadcast %c1_i32_34 : i32 to vector<2x512xi32>
    %78 = arith.cmpi sge, %73, %77 : vector<2x512xi32>
    %79 = vector.extract_strided_slice %71 {offsets = [8, 0], sizes = [1, 512], strides = [1, 1]} : vector<16x512xf32> to vector<1x512xf32>
    %80 = vector.shape_cast %79 : vector<1x512xf32> to vector<1x512xf32>
    %81 = vector.broadcast %80 : vector<1x512xf32> to vector<2x512xf32>
    %82 = vector.shape_cast %76 : vector<1x512xf32> to vector<1x512xf32>
    %83 = vector.broadcast %82 : vector<1x512xf32> to vector<2x512xf32>
    %84 = arith.select %78, %81, %83 : vector<2x512xi1>, vector<2x512xf32>
    %85 = arith.truncf %74 : vector<2x128xf32> to vector<2x128xbf16>
    %cst_35 = arith.constant dense<0.000000e+00> : vector<2x512xf32>
    %86 = tpu.matmul %85, %72, %cst_35 {dimension_numbers = #tpu.dot_dimension_numbers<[1], [0], [0], [1], [0, 0, 1, 1], [], []>} : vector<2x128xbf16>, vector<128x512xbf16>, vector<2x512xf32> -> vector<2x512xf32>
    %87 = arith.addf %84, %86 : vector<2x512xf32>
    %88 = vector.extract_strided_slice %87 {offsets = [0, 0], sizes = [2, 128], strides = [1, 1]} : vector<2x512xf32> to vector<2x128xf32>
    %89 = arith.negf %88 : vector<2x128xf32>
    %90 = math.exp %89 : vector<2x128xf32>
    %cst_36 = arith.constant 1.000000e+00 : f32
    %91 = vector.broadcast %cst_36 : f32 to vector<2x128xf32>
    %92 = arith.addf %91, %90 : vector<2x128xf32>
    %93 = arith.divf %91, %92 : vector<2x128xf32>
    %94 = vector.extract_strided_slice %87 {offsets = [0, 128], sizes = [2, 128], strides = [1, 1]} : vector<2x512xf32> to vector<2x128xf32>
    %95 = arith.negf %94 : vector<2x128xf32>
    %96 = math.exp %95 : vector<2x128xf32>
    %cst_37 = arith.constant 1.000000e+00 : f32
    %97 = vector.broadcast %cst_37 : f32 to vector<2x128xf32>
    %98 = arith.addf %97, %96 : vector<2x128xf32>
    %99 = arith.divf %97, %98 : vector<2x128xf32>
    %100 = vector.extract_strided_slice %87 {offsets = [0, 256], sizes = [2, 128], strides = [1, 1]} : vector<2x512xf32> to vector<2x128xf32>
    %101 = math.tanh %100 : vector<2x128xf32>
    %102 = vector.extract_strided_slice %87 {offsets = [0, 384], sizes = [2, 128], strides = [1, 1]} : vector<2x512xf32> to vector<2x128xf32>
    %103 = arith.negf %102 : vector<2x128xf32>
    %104 = math.exp %103 : vector<2x128xf32>
    %cst_38 = arith.constant 1.000000e+00 : f32
    %105 = vector.broadcast %cst_38 : f32 to vector<2x128xf32>
    %106 = arith.addf %105, %104 : vector<2x128xf32>
    %107 = arith.divf %105, %106 : vector<2x128xf32>
    %108 = arith.mulf %99, %75 : vector<2x128xf32>
    %109 = arith.mulf %93, %101 : vector<2x128xf32>
    %110 = arith.addf %108, %109 : vector<2x128xf32>
    %111 = math.tanh %110 : vector<2x128xf32>
    %112 = arith.mulf %107, %111 : vector<2x128xf32>
    %113 = vector.extract_strided_slice %71 {offsets = [2, 0], sizes = [1, 512], strides = [1, 1]} : vector<16x512xf32> to vector<1x512xf32>
    %c1_i32_39 = arith.constant 1 : i32
    %114 = vector.broadcast %c1_i32_39 : i32 to vector<2x512xi32>
    %115 = arith.cmpi sge, %73, %114 : vector<2x512xi32>
    %116 = vector.extract_strided_slice %71 {offsets = [10, 0], sizes = [1, 512], strides = [1, 1]} : vector<16x512xf32> to vector<1x512xf32>
    %117 = vector.shape_cast %116 : vector<1x512xf32> to vector<1x512xf32>
    %118 = vector.broadcast %117 : vector<1x512xf32> to vector<2x512xf32>
    %119 = vector.shape_cast %113 : vector<1x512xf32> to vector<1x512xf32>
    %120 = vector.broadcast %119 : vector<1x512xf32> to vector<2x512xf32>
    %121 = arith.select %115, %118, %120 : vector<2x512xi1>, vector<2x512xf32>
    %122 = arith.truncf %112 : vector<2x128xf32> to vector<2x128xbf16>
    %cst_40 = arith.constant dense<0.000000e+00> : vector<2x512xf32>
    %123 = tpu.matmul %122, %72, %cst_40 {dimension_numbers = #tpu.dot_dimension_numbers<[1], [0], [0], [1], [0, 0, 1, 1], [], []>} : vector<2x128xbf16>, vector<128x512xbf16>, vector<2x512xf32> -> vector<2x512xf32>
    %124 = arith.addf %121, %123 : vector<2x512xf32>
    %125 = vector.extract_strided_slice %124 {offsets = [0, 0], sizes = [2, 128], strides = [1, 1]} : vector<2x512xf32> to vector<2x128xf32>
    %126 = arith.negf %125 : vector<2x128xf32>
    %127 = math.exp %126 : vector<2x128xf32>
    %cst_41 = arith.constant 1.000000e+00 : f32
    %128 = vector.broadcast %cst_41 : f32 to vector<2x128xf32>
    %129 = arith.addf %128, %127 : vector<2x128xf32>
    %130 = arith.divf %128, %129 : vector<2x128xf32>
    %131 = vector.extract_strided_slice %124 {offsets = [0, 128], sizes = [2, 128], strides = [1, 1]} : vector<2x512xf32> to vector<2x128xf32>
    %132 = arith.negf %131 : vector<2x128xf32>
    %133 = math.exp %132 : vector<2x128xf32>
    %cst_42 = arith.constant 1.000000e+00 : f32
    %134 = vector.broadcast %cst_42 : f32 to vector<2x128xf32>
    %135 = arith.addf %134, %133 : vector<2x128xf32>
    %136 = arith.divf %134, %135 : vector<2x128xf32>
    %137 = vector.extract_strided_slice %124 {offsets = [0, 256], sizes = [2, 128], strides = [1, 1]} : vector<2x512xf32> to vector<2x128xf32>
    %138 = math.tanh %137 : vector<2x128xf32>
    %139 = vector.extract_strided_slice %124 {offsets = [0, 384], sizes = [2, 128], strides = [1, 1]} : vector<2x512xf32> to vector<2x128xf32>
    %140 = arith.negf %139 : vector<2x128xf32>
    %141 = math.exp %140 : vector<2x128xf32>
    %cst_43 = arith.constant 1.000000e+00 : f32
    %142 = vector.broadcast %cst_43 : f32 to vector<2x128xf32>
    %143 = arith.addf %142, %141 : vector<2x128xf32>
    %144 = arith.divf %142, %143 : vector<2x128xf32>
    %145 = arith.mulf %136, %110 : vector<2x128xf32>
    %146 = arith.mulf %130, %138 : vector<2x128xf32>
    %147 = arith.addf %145, %146 : vector<2x128xf32>
    %148 = math.tanh %147 : vector<2x128xf32>
    %149 = arith.mulf %144, %148 : vector<2x128xf32>
    %150 = vector.extract_strided_slice %71 {offsets = [4, 0], sizes = [1, 512], strides = [1, 1]} : vector<16x512xf32> to vector<1x512xf32>
    %c1_i32_44 = arith.constant 1 : i32
    %151 = vector.broadcast %c1_i32_44 : i32 to vector<2x512xi32>
    %152 = arith.cmpi sge, %73, %151 : vector<2x512xi32>
    %153 = vector.extract_strided_slice %71 {offsets = [12, 0], sizes = [1, 512], strides = [1, 1]} : vector<16x512xf32> to vector<1x512xf32>
    %154 = vector.shape_cast %153 : vector<1x512xf32> to vector<1x512xf32>
    %155 = vector.broadcast %154 : vector<1x512xf32> to vector<2x512xf32>
    %156 = vector.shape_cast %150 : vector<1x512xf32> to vector<1x512xf32>
    %157 = vector.broadcast %156 : vector<1x512xf32> to vector<2x512xf32>
    %158 = arith.select %152, %155, %157 : vector<2x512xi1>, vector<2x512xf32>
    %159 = arith.truncf %149 : vector<2x128xf32> to vector<2x128xbf16>
    %cst_45 = arith.constant dense<0.000000e+00> : vector<2x512xf32>
    %160 = tpu.matmul %159, %72, %cst_45 {dimension_numbers = #tpu.dot_dimension_numbers<[1], [0], [0], [1], [0, 0, 1, 1], [], []>} : vector<2x128xbf16>, vector<128x512xbf16>, vector<2x512xf32> -> vector<2x512xf32>
    %161 = arith.addf %158, %160 : vector<2x512xf32>
    %162 = vector.extract_strided_slice %161 {offsets = [0, 0], sizes = [2, 128], strides = [1, 1]} : vector<2x512xf32> to vector<2x128xf32>
    %163 = arith.negf %162 : vector<2x128xf32>
    %164 = math.exp %163 : vector<2x128xf32>
    %cst_46 = arith.constant 1.000000e+00 : f32
    %165 = vector.broadcast %cst_46 : f32 to vector<2x128xf32>
    %166 = arith.addf %165, %164 : vector<2x128xf32>
    %167 = arith.divf %165, %166 : vector<2x128xf32>
    %168 = vector.extract_strided_slice %161 {offsets = [0, 128], sizes = [2, 128], strides = [1, 1]} : vector<2x512xf32> to vector<2x128xf32>
    %169 = arith.negf %168 : vector<2x128xf32>
    %170 = math.exp %169 : vector<2x128xf32>
    %cst_47 = arith.constant 1.000000e+00 : f32
    %171 = vector.broadcast %cst_47 : f32 to vector<2x128xf32>
    %172 = arith.addf %171, %170 : vector<2x128xf32>
    %173 = arith.divf %171, %172 : vector<2x128xf32>
    %174 = vector.extract_strided_slice %161 {offsets = [0, 256], sizes = [2, 128], strides = [1, 1]} : vector<2x512xf32> to vector<2x128xf32>
    %175 = math.tanh %174 : vector<2x128xf32>
    %176 = vector.extract_strided_slice %161 {offsets = [0, 384], sizes = [2, 128], strides = [1, 1]} : vector<2x512xf32> to vector<2x128xf32>
    %177 = arith.negf %176 : vector<2x128xf32>
    %178 = math.exp %177 : vector<2x128xf32>
    %cst_48 = arith.constant 1.000000e+00 : f32
    %179 = vector.broadcast %cst_48 : f32 to vector<2x128xf32>
    %180 = arith.addf %179, %178 : vector<2x128xf32>
    %181 = arith.divf %179, %180 : vector<2x128xf32>
    %182 = arith.mulf %173, %147 : vector<2x128xf32>
    %183 = arith.mulf %167, %175 : vector<2x128xf32>
    %184 = arith.addf %182, %183 : vector<2x128xf32>
    %185 = math.tanh %184 : vector<2x128xf32>
    %186 = arith.mulf %181, %185 : vector<2x128xf32>
    %187 = vector.extract_strided_slice %71 {offsets = [6, 0], sizes = [1, 512], strides = [1, 1]} : vector<16x512xf32> to vector<1x512xf32>
    %c1_i32_49 = arith.constant 1 : i32
    %188 = vector.broadcast %c1_i32_49 : i32 to vector<2x512xi32>
    %189 = arith.cmpi sge, %73, %188 : vector<2x512xi32>
    %190 = vector.extract_strided_slice %71 {offsets = [14, 0], sizes = [1, 512], strides = [1, 1]} : vector<16x512xf32> to vector<1x512xf32>
    %191 = vector.shape_cast %190 : vector<1x512xf32> to vector<1x512xf32>
    %192 = vector.broadcast %191 : vector<1x512xf32> to vector<2x512xf32>
    %193 = vector.shape_cast %187 : vector<1x512xf32> to vector<1x512xf32>
    %194 = vector.broadcast %193 : vector<1x512xf32> to vector<2x512xf32>
    %195 = arith.select %189, %192, %194 : vector<2x512xi1>, vector<2x512xf32>
    %196 = arith.truncf %186 : vector<2x128xf32> to vector<2x128xbf16>
    %cst_50 = arith.constant dense<0.000000e+00> : vector<2x512xf32>
    %197 = tpu.matmul %196, %72, %cst_50 {dimension_numbers = #tpu.dot_dimension_numbers<[1], [0], [0], [1], [0, 0, 1, 1], [], []>} : vector<2x128xbf16>, vector<128x512xbf16>, vector<2x512xf32> -> vector<2x512xf32>
    %198 = arith.addf %195, %197 : vector<2x512xf32>
    %199 = vector.extract_strided_slice %198 {offsets = [0, 0], sizes = [2, 128], strides = [1, 1]} : vector<2x512xf32> to vector<2x128xf32>
    %200 = arith.negf %199 : vector<2x128xf32>
    %201 = math.exp %200 : vector<2x128xf32>
    %cst_51 = arith.constant 1.000000e+00 : f32
    %202 = vector.broadcast %cst_51 : f32 to vector<2x128xf32>
    %203 = arith.addf %202, %201 : vector<2x128xf32>
    %204 = arith.divf %202, %203 : vector<2x128xf32>
    %205 = vector.extract_strided_slice %198 {offsets = [0, 128], sizes = [2, 128], strides = [1, 1]} : vector<2x512xf32> to vector<2x128xf32>
    %206 = arith.negf %205 : vector<2x128xf32>
    %207 = math.exp %206 : vector<2x128xf32>
    %cst_52 = arith.constant 1.000000e+00 : f32
    %208 = vector.broadcast %cst_52 : f32 to vector<2x128xf32>
    %209 = arith.addf %208, %207 : vector<2x128xf32>
    %210 = arith.divf %208, %209 : vector<2x128xf32>
    %211 = vector.extract_strided_slice %198 {offsets = [0, 256], sizes = [2, 128], strides = [1, 1]} : vector<2x512xf32> to vector<2x128xf32>
    %212 = math.tanh %211 : vector<2x128xf32>
    %213 = vector.extract_strided_slice %198 {offsets = [0, 384], sizes = [2, 128], strides = [1, 1]} : vector<2x512xf32> to vector<2x128xf32>
    %214 = arith.negf %213 : vector<2x128xf32>
    %215 = math.exp %214 : vector<2x128xf32>
    %cst_53 = arith.constant 1.000000e+00 : f32
    %216 = vector.broadcast %cst_53 : f32 to vector<2x128xf32>
    %217 = arith.addf %216, %215 : vector<2x128xf32>
    %218 = arith.divf %216, %217 : vector<2x128xf32>
    %219 = arith.mulf %210, %184 : vector<2x128xf32>
    %220 = arith.mulf %204, %212 : vector<2x128xf32>
    %221 = arith.addf %219, %220 : vector<2x128xf32>
    %222 = math.tanh %221 : vector<2x128xf32>
    %223 = arith.mulf %218, %222 : vector<2x128xf32>
    %c0_54 = arith.constant 0 : index
    %c0_55 = arith.constant 0 : index
    %224 = vector.load %arg9[%c0_54, %c0_55] : memref<2x128xf32, #tpu.memory_space<vmem>>, vector<2x128xf32>
    tpu.vector_store %arg9[%c0_54, %c0_55], %223 {strides = array<i32>} : memref<2x128xf32, #tpu.memory_space<vmem>>, vector<2x128xf32>,
    %c0_56 = arith.constant 0 : index
    %c0_57 = arith.constant 0 : index
    %225 = vector.load %arg10[%c0_56, %c0_57] : memref<2x128xf32, #tpu.memory_space<vmem>>, vector<2x128xf32>
    tpu.vector_store %arg10[%c0_56, %c0_57], %221 {strides = array<i32>} : memref<2x128xf32, #tpu.memory_space<vmem>>, vector<2x128xf32>,
    %226 = arith.truncf %223 : vector<2x128xf32> to vector<2x128xbf16>
    %c0_58 = arith.constant 0 : index
    %c0_59 = arith.constant 0 : index
    %227 = vector.load %arg6[%c0_58, %c0_59] : memref<128x32xbf16, #tpu.memory_space<vmem>>, vector<128x32xbf16>
    %cst_60 = arith.constant dense<0.000000e+00> : vector<2x32xf32>
    %228 = tpu.matmul %226, %227, %cst_60 {dimension_numbers = #tpu.dot_dimension_numbers<[1], [0], [0], [1], [0, 0, 1, 1], [], []>} : vector<2x128xbf16>, vector<128x32xbf16>, vector<2x32xf32> -> vector<2x32xf32>
    %c0_61 = arith.constant 0 : index
    %c0_62 = arith.constant 0 : index
    %229 = vector.load %arg7[%c0_61, %c0_62] : memref<1x32xf32, #tpu.memory_space<vmem>>, vector<1x32xf32>
    %230 = vector.broadcast %229 : vector<1x32xf32> to vector<2x32xf32>
    %231 = arith.addf %228, %230 : vector<2x32xf32>
    %c0_63 = arith.constant 0 : index
    %c0_64 = arith.constant 0 : index
    %232 = vector.load %arg8[%c0_63, %c0_64] : memref<2x32xf32, #tpu.memory_space<vmem>>, vector<2x32xf32>
    tpu.vector_store %arg8[%c0_63, %c0_64], %231 {strides = array<i32>} : memref<2x32xf32, #tpu.memory_space<vmem>>, vector<2x32xf32>,
    return
  }
}

</mosaic_0001>

<llo_original>
// kernel: cnn_lstm_forward.1
$region0: #{cnn_lstm_forward.1}
  #allocation0 [shape = 'u32[]', space=smem, size = 0x4, offset = 0x4, fixed_abs, tag = 'smem constant byte address 0x4 - core index']
  #allocation1 [shape = 'u32[144,128]{1,0:T(1,128)}', space=vmem, size = 0x12000, scoped, tag = 'internal scratch']
  %s0 = inlined_call_operand.vmem [shape: f32[16,64], index: 0, kind: input, shape index: {}]
  %s1 = inlined_call_operand.vmem [shape: bf16[192,64], index: 1, kind: input, shape index: {}]
  %s2 = inlined_call_operand.vmem [shape: f32[1,64], index: 2, kind: input, shape index: {}]
  %s3 = inlined_call_operand.vmem [shape: bf16[64,512], index: 3, kind: input, shape index: {}]
  %s4 = inlined_call_operand.vmem [shape: bf16[128,512], index: 4, kind: input, shape index: {}]
  %s5 = inlined_call_operand.vmem [shape: f32[1,512], index: 5, kind: input, shape index: {}]
  %s6 = inlined_call_operand.vmem [shape: bf16[128,32], index: 6, kind: input, shape index: {}]
  %s7 = inlined_call_operand.vmem [shape: f32[1,32], index: 7, kind: input, shape index: {}]
  %s8 = inlined_call_operand.hbm [shape: f32[2,32], index: 8, kind: output, shape index: {0}]
  %s9 = inlined_call_operand.hbm [shape: f32[2,128], index: 9, kind: output, shape index: {1}]
  %s10 = inlined_call_operand.hbm [shape: f32[2,128], index: 10, kind: output, shape index: {2}]
  %11 = xla_tuple %s8, %s9, %s10
  %s12 = sld [smem:[#allocation0]]
  $region58: #{cnn_lstm_forward.1} parent=0
    _
  %s14 = ssub.s32 1, %s12
  %s15 = scalar_select 0, %s14, %s12
  $region1: #{cnn_lstm_forward.1} parent=0
    #allocation2 [shape = 'u8[1024]{0}', space=vmem, size = 0x400, scoped, tag = 'output window, operand 0, single buffered']
    #allocation3 [shape = 's32[1]{0}', space=sflag, size = 0x4, scoped, tag = 'scoped memory for cnn_lstm_forward.1']
    #allocation4 [shape = 'u8[1024]{0}', space=vmem, size = 0x400, scoped, tag = 'output window, operand 1, single buffered']
    #allocation5 [shape = 's32[1]{0}', space=sflag, size = 0x4, scoped, tag = 'scoped memory for cnn_lstm_forward.1']
    #allocation6 [shape = 'u8[1024]{0}', space=vmem, size = 0x400, scoped, tag = 'output window, operand 2, single buffered']
    %16 = vsyncpa [#allocation3], 0
    %17 = vsyncpa [#allocation5], 0
    // Predicated region
    $region2: #{cnn_lstm_forward.1} parent=1 // pred_check
      _
    $region3: #{cnn_lstm_forward.1} parent=1 // pred_check_branch
      %19 = sbr.rel (0) target = $region5
    $region4: #{cnn_lstm_forward.1} parent=1 // pred_region
      _
    $region5: #{cnn_lstm_forward.1} parent=1 // pred_fallthru
      _
    // Predicated region
    $region6: #{cnn_lstm_forward.1} parent=1 // pred_check
      _
    $region7: #{cnn_lstm_forward.1} parent=1 // pred_check_branch
      %21 = sbr.rel (0) target = $region9
    $region8: #{cnn_lstm_forward.1} parent=1 // pred_region
      _
    $region9: #{cnn_lstm_forward.1} parent=1 // pred_fallthru
      _
    // Predicated region
    $region10: #{cnn_lstm_forward.1} parent=1 // pred_check
      _
    $region11: #{cnn_lstm_forward.1} parent=1 // pred_check_branch
      %23 = sbr.rel (0) target = $region13
    $region12: #{cnn_lstm_forward.1} parent=1 // pred_region
      _
    $region13: #{cnn_lstm_forward.1} parent=1 // pred_fallthru
      _
    // Predicated region
    $region14: #{cnn_lstm_forward.1} parent=1 // pred_check
      _
    $region15: #{cnn_lstm_forward.1} parent=1 // pred_check_branch
      %25 = sbr.rel (0) target = $region17
    $region16: #{cnn_lstm_forward.1} parent=1 // pred_region
      _
    $region17: #{cnn_lstm_forward.1} parent=1 // pred_fallthru
      _
    // Predicated region
    $region18: #{cnn_lstm_forward.1} parent=1 // pred_check
      _
    $region19: #{cnn_lstm_forward.1} parent=1 // pred_check_branch
      %27 = sbr.rel (0) target = $region21
    $region20: #{cnn_lstm_forward.1} parent=1 // pred_region
      _
    $region21: #{cnn_lstm_forward.1} parent=1 // pred_fallthru
      _
    // Predicated region
    $region22: #{cnn_lstm_forward.1} parent=1 // pred_check
      _
    $region23: #{cnn_lstm_forward.1} parent=1 // pred_check_branch
      %29 = sbr.rel (0) target = $region25
    $region24: #{cnn_lstm_forward.1} parent=1 // pred_region
      _
    $region25: #{cnn_lstm_forward.1} parent=1 // pred_fallthru
      _
    // Predicated region
    $region26: #{cnn_lstm_forward.1} parent=1 // pred_check
      _
    $region27: #{cnn_lstm_forward.1} parent=1 // pred_check_branch
      %31 = sbr.rel (0) target = $region29
    $region28: #{cnn_lstm_forward.1} parent=1 // pred_region
      _
    $region29: #{cnn_lstm_forward.1} parent=1 // pred_fallthru
      _
    // Predicated region
    $region30: #{cnn_lstm_forward.1} parent=1 // pred_check
      _
    $region31: #{cnn_lstm_forward.1} parent=1 // pred_check_branch
      %33 = sbr.rel (0) target = $region33
    $region32: #{cnn_lstm_forward.1} parent=1 // pred_region
      _
    $region33: #{cnn_lstm_forward.1} parent=1 // pred_fallthru
      _
    %v35 = vld [vmem:[%s0] sm:$0xff]
    %v36 = vld [vmem:[%s0 + $0x8] sm:$0xff]
    %v37 = vlaneseq
    %v38 = vshrl.u32 %v37, 7
    %v39 = vadd.s32 %v38, 8
    %v40 = vlaneseq
    %v41 = vand.u32 %v40, 127
    %v42 = vsub.s32 %v38, 1
    %v43 = vsub.s32 %v39, 1
    %vm44 = vcmp.eq.s32.totalorder %v41, %v42
    %vm45 = vcmp.eq.s32.totalorder %v41, %v43
    %vm46 = vcmp.lt.s32.totalorder %v38, 0
    %v47 = vsub.s32 0, %v38
    %v48 = vsel %vm46, %v47, %v38
    %v49 = vshrl.u32 %v48, 3
    %v50 = vand.u32 %v48, 7
    %v51 = vsub.s32 0, %v50
    %v52 = vsel %vm46, %v51, %v50
    %vm53 = vcmp.lt.s32.totalorder %v39, 0
    %v54 = vsub.s32 0, %v39
    %v55 = vsel %vm53, %v54, %v39
    %v56 = vshrl.u32 %v55, 3
    %v57 = vand.u32 %v55, 7
    %v58 = vsub.s32 0, %v57
    %v59 = vsel %vm53, %v58, %v57
    %vm60 = vcmp.ne.s32.totalorder %v52, 0
    %vm61 = vcmp.ne.s32.totalorder %v59, 0
    %vm62 = vcmp.lt.s32.totalorder %v52, 0
    %vm63 = vcmp.lt.s32.totalorder %v59, 0
    %vm64 = vmand %vm62, %vm60
    %vm65 = vmand %vm63, %vm61
    %v66 = vadd.s32 %v52, 8
    %v67 = vadd.s32 %v59, 8
    %v68 = vsel %vm64, %v66, %v52
    %v69 = vsel %vm65, %v67, %v59
    %vm70 = vcmp.ne.s32.totalorder %v68, 0
    %vm71 = vcmp.ne.s32.totalorder %v69, 0
    %vm72 = vmand %vm44, %vm70
    %vm73 = vmand %vm45, %vm71
    %v74 = vsel %vm72, 1.0, 0.0
    %v75 = vsel %vm73, 1.0, 0.0
    %v76 = vadd.s32 %v38, 1
    %v77 = vadd.s32 %v39, 1
    %vm78 = vcmp.eq.s32.totalorder %v41, %v76
    %vm79 = vcmp.eq.s32.totalorder %v41, %v77
    %vm80 = vcmp.ne.s32.totalorder %v68, 7
    %vm81 = vcmp.ne.s32.totalorder %v69, 7
    %vm82 = vmand %vm78, %vm80
    %vm83 = vmand %vm79, %vm81
    %v84 = vsel %vm82, 1.0, 0.0
    %v85 = vsel %vm83, 1.0, 0.0
    %vm86 = vcmask 130048
    %v88 = vsel %vm86, %v74, 0
    %v91 = vsel %vm86, %v75, 0
    %93 = vmatprep.subr.mxu0 0.0
    %94 = vmatpush1.msra.mxu0 %v35
    %95 = vmatprep.subr.mxu0 0.0
    %96 = vmatpush1.msra.mxu0 %v36
    %97 = vmatprep.subr.mxu0 0.0
    %98 = vmatpush1.msra.mxu0 0.0
    %99 = vmatprep.subr.mxu0 0.0
    %100 = vmatpush1.msra.mxu0 0.0
    %101 = vmatprep.subr.mxu0 0.0
    %102 = vmatpush1.msra.mxu0 0.0
    %103 = vmatprep.subr.mxu0 0.0
    %104 = vmatpush1.msra.mxu0 0.0
    %105 = vmatprep.subr.mxu0 0.0
    %106 = vmatpush1.msra.mxu0 0.0
    %107 = vmatprep.subr.mxu0 0.0
    %108 = vmatpush1.msra.mxu0 0.0
    %109 = vmatprep.subr.mxu0 0.0
    %110 = vmatpush1.msra.mxu0 0.0
    %111 = vmatprep.subr.mxu0 0.0
    %112 = vmatpush1.msra.mxu0 0.0
    %113 = vmatprep.subr.mxu0 0.0
    %114 = vmatpush1.msra.mxu0 0.0
    %115 = vmatprep.subr.mxu0 0.0
    %116 = vmatpush1.msra.mxu0 0.0
    %117 = vmatprep.subr.mxu0 0.0
    %118 = vmatpush1.msra.mxu0 0.0
    %119 = vmatprep.subr.mxu0 0.0
    %120 = vmatpush1.msra.mxu0 0.0
    %121 = vmatprep.subr.mxu0 0.0
    %122 = vmatpush1.msra.mxu0 0.0
    %123 = vmatprep.subr.mxu0 0.0
    %124 = vmatpush1.msra.mxu0 0.0
    %125 = vmatprep.subr.mxu0 0.0
    %126 = vmatpush1.msra.mxu0 0.0
    %127 = vmatprep.subr.mxu0 0.0
    %128 = vmatpush1.msra.mxu0 0.0
    %129 = vmatprep.subr.mxu0 0.0
    %130 = vmatpush1.msra.mxu0 0.0
    %131 = vmatprep.subr.mxu0 0.0
    %132 = vmatpush1.msra.mxu0 0.0
    %133 = vmatprep.subr.mxu0 0.0
    %134 = vmatpush1.msra.mxu0 0.0
    %135 = vmatprep.subr.mxu0 0.0
    %136 = vmatpush1.msra.mxu0 0.0
    %137 = vmatprep.subr.mxu0 0.0
    %138 = vmatpush1.msra.mxu0 0.0
    %139 = vmatprep.subr.mxu0 0.0
    %140 = vmatpush1.msra.mxu0 0.0
    %141 = vmatprep.subr.mxu0 0.0
    %142 = vmatpush1.msra.mxu0 0.0
    %143 = vmatprep.subr.mxu0 0.0
    %144 = vmatpush1.msra.mxu0 0.0
    %145 = vmatprep.subr.mxu0 0.0
    %146 = vmatpush1.msra.mxu0 0.0
    %147 = vmatprep.subr.mxu0 0.0
    %148 = vmatpush1.msra.mxu0 0.0
    %149 = vmatprep.subr.mxu0 0.0
    %150 = vmatpush1.msra.mxu0 0.0
    %151 = vmatprep.subr.mxu0 0.0
    %152 = vmatpush1.msra.mxu0 0.0
    %153 = vmatprep.subr.mxu0 0.0
    %154 = vmatpush1.msra.mxu0 0.0
    %155 = vmatprep.subr.mxu0 0.0
    %156 = vmatpush1.msra.mxu0 0.0
    %157 = vmatprep.mubr.f32.mxu0 0.0
    %158 = vmatmul.mubr.f32.gmra.mrb[0].mxu0 %v88
    %v159 = vpop.f32.mrb[0].mxu0
    %v160 = vadd.f32 0.0, %v159
    %v161 = vpop.f32.mrb[0].mxu0
    %162 = vmatprep.mubr.f32.mxu0 0.0
    %163 = vmatmul.mubr.f32.gmra.mrb[0].mxu0 %v91
    %v164 = vpop.f32.mrb[0].mxu0
    %v165 = vadd.f32 0.0, %v164
    %v166 = vpop.f32.mrb[0].mxu0
    %167 = vdwg.mxu0
    %v169 = vsel %vm86, %v84, 0
    %v172 = vsel %vm86, %v85, 0
    %174 = vmatprep.subr.mxu0 0.0
    %175 = vmatpush1.msra.mxu0 %v35
    %176 = vmatprep.subr.mxu0 0.0
    %177 = vmatpush1.msra.mxu0 %v36
    %178 = vmatprep.subr.mxu0 0.0
    %179 = vmatpush1.msra.mxu0 0.0
    %180 = vmatprep.subr.mxu0 0.0
    %181 = vmatpush1.msra.mxu0 0.0
    %182 = vmatprep.subr.mxu0 0.0
    %183 = vmatpush1.msra.mxu0 0.0
    %184 = vmatprep.subr.mxu0 0.0
    %185 = vmatpush1.msra.mxu0 0.0
    %186 = vmatprep.subr.mxu0 0.0
    %187 = vmatpush1.msra.mxu0 0.0
    %188 = vmatprep.subr.mxu0 0.0
    %189 = vmatpush1.msra.mxu0 0.0
    %190 = vmatprep.subr.mxu0 0.0
    %191 = vmatpush1.msra.mxu0 0.0
    %192 = vmatprep.subr.mxu0 0.0
    %193 = vmatpush1.msra.mxu0 0.0
    %194 = vmatprep.subr.mxu0 0.0
    %195 = vmatpush1.msra.mxu0 0.0
    %196 = vmatprep.subr.mxu0 0.0
    %197 = vmatpush1.msra.mxu0 0.0
    %198 = vmatprep.subr.mxu0 0.0
    %199 = vmatpush1.msra.mxu0 0.0
    %200 = vmatprep.subr.mxu0 0.0
    %201 = vmatpush1.msra.mxu0 0.0
    %202 = vmatprep.subr.mxu0 0.0
    %203 = vmatpush1.msra.mxu0 0.0
    %204 = vmatprep.subr.mxu0 0.0
    %205 = vmatpush1.msra.mxu0 0.0
    %206 = vmatprep.subr.mxu0 0.0
    %207 = vmatpush1.msra.mxu0 0.0
    %208 = vmatprep.subr.mxu0 0.0
    %209 = vmatpush1.msra.mxu0 0.0
    %210 = vmatprep.subr.mxu0 0.0
    %211 = vmatpush1.msra.mxu0 0.0
    %212 = vmatprep.subr.mxu0 0.0
    %213 = vmatpush1.msra.mxu0 0.0
    %214 = vmatprep.subr.mxu0 0.0
    %215 = vmatpush1.msra.mxu0 0.0
    %216 = vmatprep.subr.mxu0 0.0
    %217 = vmatpush1.msra.mxu0 0.0
    %218 = vmatprep.subr.mxu0 0.0
    %219 = vmatpush1.msra.mxu0 0.0
    %220 = vmatprep.subr.mxu0 0.0
    %221 = vmatpush1.msra.mxu0 0.0
    %222 = vmatprep.subr.mxu0 0.0
    %223 = vmatpush1.msra.mxu0 0.0
    %224 = vmatprep.subr.mxu0 0.0
    %225 = vmatpush1.msra.mxu0 0.0
    %226 = vmatprep.subr.mxu0 0.0
    %227 = vmatpush1.msra.mxu0 0.0
    %228 = vmatprep.subr.mxu0 0.0
    %229 = vmatpush1.msra.mxu0 0.0
    %230 = vmatprep.subr.mxu0 0.0
    %231 = vmatpush1.msra.mxu0 0.0
    %232 = vmatprep.subr.mxu0 0.0
    %233 = vmatpush1.msra.mxu0 0.0
    %234 = vmatprep.subr.mxu0 0.0
    %235 = vmatpush1.msra.mxu0 0.0
    %236 = vmatprep.subr.mxu0 0.0
    %237 = vmatpush1.msra.mxu0 0.0
    %238 = vmatprep.mubr.f32.mxu0 0.0
    %239 = vmatmul.mubr.f32.gmra.mrb[0].mxu0 %v169
    %v240 = vpop.f32.mrb[0].mxu0
    %v241 = vadd.f32 0.0, %v240
    %v242 = vpop.f32.mrb[0].mxu0
    %243 = vmatprep.mubr.f32.mxu0 0.0
    %244 = vmatmul.mubr.f32.gmra.mrb[0].mxu0 %v172
    %v245 = vpop.f32.mrb[0].mxu0
    %v246 = vadd.f32 0.0, %v245
    %v247 = vpop.f32.mrb[0].mxu0
    %248 = vdwg.mxu0
    %251 = vrot.lane.b32.xlu0 %v35, 64
    %v252 = vpop.permute.xlu0 %251
    %253 = vrot.lane.b32.xlu0 %v36, 64
    %v254 = vpop.permute.xlu0 %253
    %vm257 = vcmask 523264
    %v258 = vsel %vm257, %v160, %v252
    %v259 = vsel %vm257, %v165, %v254
    %v260 = vpack.c.bf16 %v259, %v258
    %v261 = vpack.c.bf16 %v246, %v241
    %v262 = vld [vmem:[%s1] sm:$0xf]
    %v263 = vld [vmem:[%s1 + $0x4] sm:$0xf]
    %v264 = vld [vmem:[%s1 + $0x8] sm:$0xf]
    %v265 = vld [vmem:[%s1 + $0xc] sm:$0xf]
    %v266 = vld [vmem:[%s1 + $0x10] sm:$0xf]
    %v267 = vld [vmem:[%s1 + $0x14] sm:$0xf]
    %v268 = vld [vmem:[%s1 + $0x18] sm:$0xf]
    %v269 = vld [vmem:[%s1 + $0x1c] sm:$0xf]
    %v270 = vld [vmem:[%s1 + $0x20] sm:$0xf]
    %v271 = vld [vmem:[%s1 + $0x24] sm:$0xf]
    %v272 = vld [vmem:[%s1 + $0x28] sm:$0xf]
    %v273 = vld [vmem:[%s1 + $0x2c] sm:$0xf]
    %v274 = vld [vmem:[%s1 + $0x30] sm:$0xf]
    %v275 = vld [vmem:[%s1 + $0x34] sm:$0xf]
    %v276 = vld [vmem:[%s1 + $0x38] sm:$0xf]
    %v277 = vld [vmem:[%s1 + $0x3c] sm:$0xf]
    %v278 = vld [vmem:[%s1 + $0x40] sm:$0xf]
    %v279 = vld [vmem:[%s1 + $0x44] sm:$0xf]
    %v280 = vld [vmem:[%s1 + $0x48] sm:$0xf]
    %v281 = vld [vmem:[%s1 + $0x4c] sm:$0xf]
    %v282 = vld [vmem:[%s1 + $0x50] sm:$0xf]
    %v283 = vld [vmem:[%s1 + $0x54] sm:$0xf]
    %v284 = vld [vmem:[%s1 + $0x58] sm:$0xf]
    %v285 = vld [vmem:[%s1 + $0x5c] sm:$0xf]
    %v286 = vld [vmem:[%s2] sm:$0x1]
    %v288 = vlaneseq
    %v289 = vshrl.u32 %v288, 7
    %v290 = vsub.s32 0, %v289
    %v291 = vrot.slane %v286, %v290
    %v317 = vunpack.c.l.b16 %v262
    %v318 = vunpack.c.l.b16 %v263
    %v319 = vunpack.c.l.b16 %v264
    %v320 = vunpack.c.l.b16 %v265
    %v321 = vunpack.c.l.b16 %v266
    %v322 = vunpack.c.l.b16 %v267
    %v323 = vunpack.c.l.b16 %v268
    %v324 = vunpack.c.l.b16 %v269
    %v325 = vunpack.c.l.b16 %v270
    %v326 = vunpack.c.l.b16 %v271
    %v327 = vunpack.c.l.b16 %v272
    %v328 = vunpack.c.l.b16 %v273
    %v329 = vunpack.c.l.b16 %v274
    %v330 = vunpack.c.l.b16 %v275
    %v331 = vunpack.c.l.b16 %v276
    %v332 = vunpack.c.l.b16 %v277
    %v333 = vunpack.c.l.b16 %v278
    %v334 = vunpack.c.l.b16 %v279
    %v335 = vunpack.c.l.b16 %v280
    %v336 = vunpack.c.l.b16 %v281
    %v337 = vunpack.c.l.b16 %v282
    %v338 = vunpack.c.l.b16 %v283
    %v339 = vunpack.c.l.b16 %v284
    %v340 = vunpack.c.l.b16 %v285
    %v341 = vpack.c.b16 %v318, %v317
    %v342 = vpack.c.b16 %v320, %v319
    %v343 = vpack.c.b16 %v322, %v321
    %v344 = vpack.c.b16 %v324, %v323
    %v345 = vpack.c.b16 %v326, %v325
    %v346 = vpack.c.b16 %v328, %v327
    %v347 = vpack.c.b16 %v330, %v329
    %v348 = vpack.c.b16 %v332, %v331
    %v349 = vpack.c.b16 %v334, %v333
    %v350 = vpack.c.b16 %v336, %v335
    %v351 = vpack.c.b16 %v338, %v337
    %v352 = vpack.c.b16 %v340, %v339
    %v366 = vsel %vm257, %v261, 0
    %368 = vmatprep.subr.bf16.mxu0 0
    %369 = vmatpush1.bf16.msra.mxu0 %v341
    %370 = vmatprep.subr.bf16.mxu0 0
    %371 = vmatpush1.bf16.msra.mxu0 %v342
    %372 = vmatprep.subr.bf16.mxu0 0
    %373 = vmatpush1.bf16.msra.mxu0 %v343
    %374 = vmatprep.subr.bf16.mxu0 0
    %375 = vmatpush1.bf16.msra.mxu0 %v344
    %376 = vmatprep.subr.bf16.mxu0 0
    %377 = vmatpush1.bf16.msra.mxu0 %v345
    %378 = vmatprep.subr.bf16.mxu0 0
    %379 = vmatpush1.bf16.msra.mxu0 %v346
    %380 = vmatprep.subr.bf16.mxu0 0
    %381 = vmatpush1.bf16.msra.mxu0 %v347
    %382 = vmatprep.subr.bf16.mxu0 0
    %383 = vmatpush1.bf16.msra.mxu0 %v348
    %384 = vmatprep.subr.bf16.mxu0 0
    %385 = vmatpush1.bf16.msra.mxu0 %v349
    %386 = vmatprep.subr.bf16.mxu0 0
    %387 = vmatpush1.bf16.msra.mxu0 %v350
    %388 = vmatprep.subr.bf16.mxu0 0
    %389 = vmatpush1.bf16.msra.mxu0 %v351
    %390 = vmatprep.subr.bf16.mxu0 0
    %391 = vmatpush1.bf16.msra.mxu0 %v352
    %392 = vmatprep.subr.bf16.mxu0 0
    %393 = vmatpush1.bf16.msra.mxu0 0
    %394 = vmatprep.subr.bf16.mxu0 0
    %395 = vmatpush1.bf16.msra.mxu0 0
    %396 = vmatprep.subr.bf16.mxu0 0
    %397 = vmatpush1.bf16.msra.mxu0 0
    %398 = vmatprep.subr.bf16.mxu0 0
    %399 = vmatpush1.bf16.msra.mxu0 0
    %400 = vmatprep.mubr.bf16.mxu0 %v366
    %401 = vmatmul.mubr.bf16.gmra.mrb[0].mxu0 %v260
    %v402 = vpop.f32.mrb[0].mxu0
    %v403 = vadd.f32 %v291, %v402
    %v404 = vpop.f32.mrb[0].mxu0
    %v405 = vpop.f32.mrb[0].mxu0
    %v406 = vadd.f32 %v291, %v405
    %v407 = vpop.f32.mrb[0].mxu0
    %408 = vdwg.mxu0
    %v409 = vmax.f32 %v403, 0.0
    %v410 = vmax.f32 %v406, 0.0
    %411 = vmatprep.subr.mxu0 0.0
    %412 = vmatpush1.msra.mxu0 %v409
    %413 = vmatprep.subr.mxu0 0.0
    %414 = vmatpush1.msra.mxu0 %v410
    %415 = vmatprep.subr.mxu0 0.0
    %416 = vmatpush1.msra.mxu0 0.0
    %417 = vmatprep.subr.mxu0 0.0
    %418 = vmatpush1.msra.mxu0 0.0
    %419 = vmatprep.subr.mxu0 0.0
    %420 = vmatpush1.msra.mxu0 0.0
    %421 = vmatprep.subr.mxu0 0.0
    %422 = vmatpush1.msra.mxu0 0.0
    %423 = vmatprep.subr.mxu0 0.0
    %424 = vmatpush1.msra.mxu0 0.0
    %425 = vmatprep.subr.mxu0 0.0
    %426 = vmatpush1.msra.mxu0 0.0
    %427 = vmatprep.subr.mxu0 0.0
    %428 = vmatpush1.msra.mxu0 0.0
    %429 = vmatprep.subr.mxu0 0.0
    %430 = vmatpush1.msra.mxu0 0.0
    %431 = vmatprep.subr.mxu0 0.0
    %432 = vmatpush1.msra.mxu0 0.0
    %433 = vmatprep.subr.mxu0 0.0
    %434 = vmatpush1.msra.mxu0 0.0
    %435 = vmatprep.subr.mxu0 0.0
    %436 = vmatpush1.msra.mxu0 0.0
    %437 = vmatprep.subr.mxu0 0.0
    %438 = vmatpush1.msra.mxu0 0.0
    %439 = vmatprep.subr.mxu0 0.0
    %440 = vmatpush1.msra.mxu0 0.0
    %441 = vmatprep.subr.mxu0 0.0
    %442 = vmatpush1.msra.mxu0 0.0
    %443 = vmatprep.subr.mxu0 0.0
    %444 = vmatpush1.msra.mxu0 0.0
    %445 = vmatprep.subr.mxu0 0.0
    %446 = vmatpush1.msra.mxu0 0.0
    %447 = vmatprep.subr.mxu0 0.0
    %448 = vmatpush1.msra.mxu0 0.0
    %449 = vmatprep.subr.mxu0 0.0
    %450 = vmatpush1.msra.mxu0 0.0
    %451 = vmatprep.subr.mxu0 0.0
    %452 = vmatpush1.msra.mxu0 0.0
    %453 = vmatprep.subr.mxu0 0.0
    %454 = vmatpush1.msra.mxu0 0.0
    %455 = vmatprep.subr.mxu0 0.0
    %456 = vmatpush1.msra.mxu0 0.0
    %457 = vmatprep.subr.mxu0 0.0
    %458 = vmatpush1.msra.mxu0 0.0
    %459 = vmatprep.subr.mxu0 0.0
    %460 = vmatpush1.msra.mxu0 0.0
    %461 = vmatprep.subr.mxu0 0.0
    %462 = vmatpush1.msra.mxu0 0.0
    %463 = vmatprep.subr.mxu0 0.0
    %464 = vmatpush1.msra.mxu0 0.0
    %465 = vmatprep.subr.mxu0 0.0
    %466 = vmatpush1.msra.mxu0 0.0
    %467 = vmatprep.subr.mxu0 0.0
    %468 = vmatpush1.msra.mxu0 0.0
    %469 = vmatprep.subr.mxu0 0.0
    %470 = vmatpush1.msra.mxu0 0.0
    %471 = vmatprep.subr.mxu0 0.0
    %472 = vmatpush1.msra.mxu0 0.0
    %473 = vmatprep.subr.mxu0 0.0
    %474 = vmatpush1.msra.mxu0 0.0
    %475 = vmatprep.mubr.f32.mxu0 0.0
    %476 = vmatmul.mubr.f32.gmra.mrb[0].mxu0 %v169
    %v477 = vpop.f32.mrb[0].mxu0
    %v478 = vadd.f32 0.0, %v477
    %v479 = vpop.f32.mrb[0].mxu0
    %480 = vmatprep.mubr.f32.mxu0 0.0
    %481 = vmatmul.mubr.f32.gmra.mrb[0].mxu0 %v172
    %v482 = vpop.f32.mrb[0].mxu0
    %v483 = vadd.f32 0.0, %v482
    %v484 = vpop.f32.mrb[0].mxu0
    %485 = vdwg.mxu0
    %v486 = vmax.f32 %v409, %v478
    %v487 = vmax.f32 %v410, %v483
    %v488 = vpack.c.bf16 %v487, %v486
    %v489 = vld [vmem:[%s3] sm:$0xff]
    %v490 = vld [vmem:[%s3 + $0x8] sm:$0xff]
    %v491 = vld [vmem:[%s3 + $0x10] sm:$0xff]
    %v492 = vld [vmem:[%s3 + $0x18] sm:$0xff]
    %v493 = vld [vmem:[%s3 + $0x20] sm:$0xff]
    %v494 = vld [vmem:[%s3 + $0x28] sm:$0xff]
    %v495 = vld [vmem:[%s3 + $0x30] sm:$0xff]
    %v496 = vld [vmem:[%s3 + $0x38] sm:$0xff]
    %v497 = vld [vmem:[%s3 + $0x40] sm:$0xff]
    %v498 = vld [vmem:[%s3 + $0x48] sm:$0xff]
    %v499 = vld [vmem:[%s3 + $0x50] sm:$0xff]
    %v500 = vld [vmem:[%s3 + $0x58] sm:$0xff]
    %v501 = vld [vmem:[%s3 + $0x60] sm:$0xff]
    %v502 = vld [vmem:[%s3 + $0x68] sm:$0xff]
    %v503 = vld [vmem:[%s3 + $0x70] sm:$0xff]
    %v504 = vld [vmem:[%s3 + $0x78] sm:$0xff]
    %v505 = vld [vmem:[%s5] sm:$0xf]
    %v507 = vlaneseq
    %v508 = vshrl.u32 %v507, 7
    %v509 = vsub.s32 0, %v508
    %v510 = vrot.slane %v505, %v509
    %v511 = vlaneseq
    %v512 = vshrl.u32 %v511, 7
    %v513 = vsub.s32 1, %v512
    %v514 = vrot.slane %v505, %v513
    %v515 = vlaneseq
    %v516 = vshrl.u32 %v515, 7
    %v517 = vsub.s32 2, %v516
    %v518 = vrot.slane %v505, %v517
    %v519 = vlaneseq
    %v520 = vshrl.u32 %v519, 7
    %v521 = vsub.s32 3, %v520
    %v522 = vrot.slane %v505, %v521
    %v543 = vunpack.c.l.b16 %v489
    %v544 = vunpack.c.h.b16 %v489
    %v545 = vunpack.c.l.b16 %v490
    %v546 = vunpack.c.h.b16 %v490
    %v547 = vunpack.c.l.b16 %v491
    %v548 = vunpack.c.h.b16 %v491
    %v549 = vunpack.c.l.b16 %v492
    %v550 = vunpack.c.h.b16 %v492
    %v551 = vunpack.c.l.b16 %v493
    %v552 = vunpack.c.h.b16 %v493
    %v553 = vunpack.c.l.b16 %v494
    %v554 = vunpack.c.h.b16 %v494
    %v555 = vunpack.c.l.b16 %v495
    %v556 = vunpack.c.h.b16 %v495
    %v557 = vunpack.c.l.b16 %v496
    %v558 = vunpack.c.h.b16 %v496
    %v559 = vunpack.c.l.b16 %v497
    %v560 = vunpack.c.h.b16 %v497
    %v561 = vunpack.c.l.b16 %v498
    %v562 = vunpack.c.h.b16 %v498
    %v563 = vunpack.c.l.b16 %v499
    %v564 = vunpack.c.h.b16 %v499
    %v565 = vunpack.c.l.b16 %v500
    %v566 = vunpack.c.h.b16 %v500
    %v567 = vunpack.c.l.b16 %v501
    %v568 = vunpack.c.h.b16 %v501
    %v569 = vunpack.c.l.b16 %v502
    %v570 = vunpack.c.h.b16 %v502
    %v571 = vunpack.c.l.b16 %v503
    %v572 = vunpack.c.h.b16 %v503
    %v573 = vunpack.c.l.b16 %v504
    %v574 = vunpack.c.h.b16 %v504
    %v575 = vpack.c.b16 %v547, %v543
    %v576 = vpack.c.b16 %v548, %v544
    %v577 = vpack.c.b16 %v549, %v545
    %v578 = vpack.c.b16 %v550, %v546
    %v579 = vpack.c.b16 %v555, %v551
    %v580 = vpack.c.b16 %v556, %v552
    %v581 = vpack.c.b16 %v557, %v553
    %v582 = vpack.c.b16 %v558, %v554
    %v583 = vpack.c.b16 %v563, %v559
    %v584 = vpack.c.b16 %v564, %v560
    %v585 = vpack.c.b16 %v565, %v561
    %v586 = vpack.c.b16 %v566, %v562
    %v587 = vpack.c.b16 %v571, %v567
    %v588 = vpack.c.b16 %v572, %v568
    %v589 = vpack.c.b16 %v573, %v569
    %v590 = vpack.c.b16 %v574, %v570
    %v608 = vsel %vm257, %v488, 0
    %610 = vmatprep.subr.bf16.mxu0 %v576
    %611 = vmatpush1.bf16.msra.mxu0 %v575
    %612 = vmatprep.subr.bf16.mxu0 %v580
    %613 = vmatpush1.bf16.msra.mxu0 %v579
    %614 = vmatprep.subr.bf16.mxu0 %v584
    %615 = vmatpush1.bf16.msra.mxu0 %v583
    %616 = vmatprep.subr.bf16.mxu0 %v588
    %617 = vmatpush1.bf16.msra.mxu0 %v587
    %618 = vmatprep.subr.bf16.mxu0 0
    %619 = vmatpush1.bf16.msra.mxu0 0
    %620 = vmatprep.subr.bf16.mxu0 0
    %621 = vmatpush1.bf16.msra.mxu0 0
    %622 = vmatprep.subr.bf16.mxu0 0
    %623 = vmatpush1.bf16.msra.mxu0 0
    %624 = vmatprep.subr.bf16.mxu0 0
    %625 = vmatpush1.bf16.msra.mxu0 0
    %626 = vmatprep.subr.bf16.mxu0 0
    %627 = vmatpush1.bf16.msra.mxu0 0
    %628 = vmatprep.subr.bf16.mxu0 0
    %629 = vmatpush1.bf16.msra.mxu0 0
    %630 = vmatprep.subr.bf16.mxu0 0
    %631 = vmatpush1.bf16.msra.mxu0 0
    %632 = vmatprep.subr.bf16.mxu0 0
    %633 = vmatpush1.bf16.msra.mxu0 0
    %634 = vmatprep.subr.bf16.mxu0 0
    %635 = vmatpush1.bf16.msra.mxu0 0
    %636 = vmatprep.subr.bf16.mxu0 0
    %637 = vmatpush1.bf16.msra.mxu0 0
    %638 = vmatprep.subr.bf16.mxu0 0
    %639 = vmatpush1.bf16.msra.mxu0 0
    %640 = vmatprep.subr.bf16.mxu0 0
    %641 = vmatpush1.bf16.msra.mxu0 0
    %642 = vmatprep.mubr.bf16.mxu0 0
    %643 = vmatmul.mubr.bf16.gmra.mrb[0].mxu0 %v608
    %v644 = vpop.f32.mrb[0].mxu0
    %v645 = vadd.f32 %v510, %v644
    %v646 = vpop.f32.mrb[0].mxu0
    %v647 = vadd.f32 %v514, %v646
    %v648 = vpop.f32.mrb[0].mxu0
    %v649 = vadd.f32 %v510, %v648
    %v650 = vpop.f32.mrb[0].mxu0
    %v651 = vadd.f32 %v514, %v650
    %652 = vdwg.mxu0
    %653 = vmatprep.subr.bf16.mxu0 %v578
    %654 = vmatpush1.bf16.msra.mxu0 %v577
    %655 = vmatprep.subr.bf16.mxu0 %v582
    %656 = vmatpush1.bf16.msra.mxu0 %v581
    %657 = vmatprep.subr.bf16.mxu0 %v586
    %658 = vmatpush1.bf16.msra.mxu0 %v585
    %659 = vmatprep.subr.bf16.mxu0 %v590
    %660 = vmatpush1.bf16.msra.mxu0 %v589
    %661 = vmatprep.subr.bf16.mxu0 0
    %662 = vmatpush1.bf16.msra.mxu0 0
    %663 = vmatprep.subr.bf16.mxu0 0
    %664 = vmatpush1.bf16.msra.mxu0 0
    %665 = vmatprep.subr.bf16.mxu0 0
    %666 = vmatpush1.bf16.msra.mxu0 0
    %667 = vmatprep.subr.bf16.mxu0 0
    %668 = vmatpush1.bf16.msra.mxu0 0
    %669 = vmatprep.subr.bf16.mxu0 0
    %670 = vmatpush1.bf16.msra.mxu0 0
    %671 = vmatprep.subr.bf16.mxu0 0
    %672 = vmatpush1.bf16.msra.mxu0 0
    %673 = vmatprep.subr.bf16.mxu0 0
    %674 = vmatpush1.bf16.msra.mxu0 0
    %675 = vmatprep.subr.bf16.mxu0 0
    %676 = vmatpush1.bf16.msra.mxu0 0
    %677 = vmatprep.subr.bf16.mxu0 0
    %678 = vmatpush1.bf16.msra.mxu0 0
    %679 = vmatprep.subr.bf16.mxu0 0
    %680 = vmatpush1.bf16.msra.mxu0 0
    %681 = vmatprep.subr.bf16.mxu0 0
    %682 = vmatpush1.bf16.msra.mxu0 0
    %683 = vmatprep.subr.bf16.mxu0 0
    %684 = vmatpush1.bf16.msra.mxu0 0
    %685 = vmatprep.mubr.bf16.mxu0 0
    %686 = vmatmul.mubr.bf16.gmra.mrb[0].mxu0 %v608
    %v687 = vpop.f32.mrb[0].mxu0
    %v688 = vadd.f32 %v518, %v687
    %v689 = vpop.f32.mrb[0].mxu0
    %v690 = vadd.f32 %v522, %v689
    %v691 = vpop.f32.mrb[0].mxu0
    %v692 = vadd.f32 %v518, %v691
    %v693 = vpop.f32.mrb[0].mxu0
    %v694 = vadd.f32 %v522, %v693
    %695 = vdwg.mxu0
    %v696 = vld [vmem:[%s4] sm:$0xff]
    %v697 = vld [vmem:[%s4 + $0x8] sm:$0xff]
    %v698 = vld [vmem:[%s4 + $0x10] sm:$0xff]
    %v699 = vld [vmem:[%s4 + $0x18] sm:$0xff]
    %v700 = vld [vmem:[%s4 + $0x20] sm:$0xff]
    %v701 = vld [vmem:[%s4 + $0x28] sm:$0xff]
    %v702 = vld [vmem:[%s4 + $0x30] sm:$0xff]
    %v703 = vld [vmem:[%s4 + $0x38] sm:$0xff]
    %v704 = vld [vmem:[%s4 + $0x40] sm:$0xff]
    %v705 = vld [vmem:[%s4 + $0x48] sm:$0xff]
    %v706 = vld [vmem:[%s4 + $0x50] sm:$0xff]
    %v707 = vld [vmem:[%s4 + $0x58] sm:$0xff]
    %v708 = vld [vmem:[%s4 + $0x60] sm:$0xff]
    %v709 = vld [vmem:[%s4 + $0x68] sm:$0xff]
    %v710 = vld [vmem:[%s4 + $0x70] sm:$0xff]
    %v711 = vld [vmem:[%s4 + $0x78] sm:$0xff]
    %v712 = vld [vmem:[%s4 + $0x80] sm:$0xff]
    %v713 = vld [vmem:[%s4 + $0x88] sm:$0xff]
    %v714 = vld [vmem:[%s4 + $0x90] sm:$0xff]
    %v715 = vld [vmem:[%s4 + $0x98] sm:$0xff]
    %v716 = vld [vmem:[%s4 + $0xa0] sm:$0xff]
    %v717 = vld [vmem:[%s4 + $0xa8] sm:$0xff]
    %v718 = vld [vmem:[%s4 + $0xb0] sm:$0xff]
    %v719 = vld [vmem:[%s4 + $0xb8] sm:$0xff]
    %v720 = vld [vmem:[%s4 + $0xc0] sm:$0xff]
    %v721 = vld [vmem:[%s4 + $0xc8] sm:$0xff]
    %v722 = vld [vmem:[%s4 + $0xd0] sm:$0xff]
    %v723 = vld [vmem:[%s4 + $0xd8] sm:$0xff]
    %v724 = vld [vmem:[%s4 + $0xe0] sm:$0xff]
    %v725 = vld [vmem:[%s4 + $0xe8] sm:$0xff]
    %v726 = vld [vmem:[%s4 + $0xf0] sm:$0xff]
    %v727 = vld [vmem:[%s4 + $0xf8] sm:$0xff]
    %vm728 = vcmp.ge.s32.totalorder %v38, 1
    %v729 = vlaneseq
    %v730 = vshrl.u32 %v729, 7
    %v731 = vsub.s32 0, %v730
    %v732 = vrot.slane %v649, %v731
    %v733 = vlaneseq
    %v734 = vshrl.u32 %v733, 7
    %v735 = vsub.s32 0, %v734
    %v736 = vrot.slane %v651, %v735
    %v737 = vlaneseq
    %v738 = vshrl.u32 %v737, 7
    %v739 = vsub.s32 0, %v738
    %v740 = vrot.slane %v692, %v739
    %v741 = vlaneseq
    %v742 = vshrl.u32 %v741, 7
    %v743 = vsub.s32 0, %v742
    %v744 = vrot.slane %v694, %v743
    %v745 = vlaneseq
    %v746 = vshrl.u32 %v745, 7
    %v747 = vsub.s32 0, %v746
    %v748 = vrot.slane %v645, %v747
    %v749 = vlaneseq
    %v750 = vshrl.u32 %v749, 7
    %v751 = vsub.s32 0, %v750
    %v752 = vrot.slane %v647, %v751
    %v753 = vlaneseq
    %v754 = vshrl.u32 %v753, 7
    %v755 = vsub.s32 0, %v754
    %v756 = vrot.slane %v688, %v755
    %v757 = vlaneseq
    %v758 = vshrl.u32 %v757, 7
    %v759 = vsub.s32 0, %v758
    %v760 = vrot.slane %v690, %v759
    %v761 = vsel %vm728, %v732, %v748
    %v762 = vsel %vm728, %v736, %v752
    %v763 = vsel %vm728, %v740, %v756
    %v764 = vsel %vm728, %v744, %v760
    %v797 = vunpack.c.l.b16 %v696
    %v798 = vunpack.c.h.b16 %v696
    %v799 = vunpack.c.l.b16 %v697
    %v800 = vunpack.c.h.b16 %v697
    %v801 = vunpack.c.l.b16 %v698
    %v802 = vunpack.c.h.b16 %v698
    %v803 = vunpack.c.l.b16 %v699
    %v804 = vunpack.c.h.b16 %v699
    %v805 = vunpack.c.l.b16 %v700
    %v806 = vunpack.c.h.b16 %v700
    %v807 = vunpack.c.l.b16 %v701
    %v808 = vunpack.c.h.b16 %v701
    %v809 = vunpack.c.l.b16 %v702
    %v810 = vunpack.c.h.b16 %v702
    %v811 = vunpack.c.l.b16 %v703
    %v812 = vunpack.c.h.b16 %v703
    %v813 = vunpack.c.l.b16 %v704
    %v814 = vunpack.c.h.b16 %v704
    %v815 = vunpack.c.l.b16 %v705
    %v816 = vunpack.c.h.b16 %v705
    %v817 = vunpack.c.l.b16 %v706
    %v818 = vunpack.c.h.b16 %v706
    %v819 = vunpack.c.l.b16 %v707
    %v820 = vunpack.c.h.b16 %v707
    %v821 = vunpack.c.l.b16 %v708
    %v822 = vunpack.c.h.b16 %v708
    %v823 = vunpack.c.l.b16 %v709
    %v824 = vunpack.c.h.b16 %v709
    %v825 = vunpack.c.l.b16 %v710
    %v826 = vunpack.c.h.b16 %v710
    %v827 = vunpack.c.l.b16 %v711
    %v828 = vunpack.c.h.b16 %v711
    %v829 = vunpack.c.l.b16 %v712
    %v830 = vunpack.c.h.b16 %v712
    %v831 = vunpack.c.l.b16 %v713
    %v832 = vunpack.c.h.b16 %v713
    %v833 = vunpack.c.l.b16 %v714
    %v834 = vunpack.c.h.b16 %v714
    %v835 = vunpack.c.l.b16 %v715
    %v836 = vunpack.c.h.b16 %v715
    %v837 = vunpack.c.l.b16 %v716
    %v838 = vunpack.c.h.b16 %v716
    %v839 = vunpack.c.l.b16 %v717
    %v840 = vunpack.c.h.b16 %v717
    %v841 = vunpack.c.l.b16 %v718
    %v842 = vunpack.c.h.b16 %v718
    %v843 = vunpack.c.l.b16 %v719
    %v844 = vunpack.c.h.b16 %v719
    %v845 = vunpack.c.l.b16 %v720
    %v846 = vunpack.c.h.b16 %v720
    %v847 = vunpack.c.l.b16 %v721
    %v848 = vunpack.c.h.b16 %v721
    %v849 = vunpack.c.l.b16 %v722
    %v850 = vunpack.c.h.b16 %v722
    %v851 = vunpack.c.l.b16 %v723
    %v852 = vunpack.c.h.b16 %v723
    %v853 = vunpack.c.l.b16 %v724
    %v854 = vunpack.c.h.b16 %v724
    %v855 = vunpack.c.l.b16 %v725
    %v856 = vunpack.c.h.b16 %v725
    %v857 = vunpack.c.l.b16 %v726
    %v858 = vunpack.c.h.b16 %v726
    %v859 = vunpack.c.l.b16 %v727
    %v860 = vunpack.c.h.b16 %v727
    %v861 = vpack.c.b16 %v801, %v797
    %v862 = vpack.c.b16 %v802, %v798
    %v863 = vpack.c.b16 %v803, %v799
    %v864 = vpack.c.b16 %v804, %v800
    %v865 = vpack.c.b16 %v809, %v805
    %v866 = vpack.c.b16 %v810, %v806
    %v867 = vpack.c.b16 %v811, %v807
    %v868 = vpack.c.b16 %v812, %v808
    %v869 = vpack.c.b16 %v817, %v813
    %v870 = vpack.c.b16 %v818, %v814
    %v871 = vpack.c.b16 %v819, %v815
    %v872 = vpack.c.b16 %v820, %v816
    %v873 = vpack.c.b16 %v825, %v821
    %v874 = vpack.c.b16 %v826, %v822
    %v875 = vpack.c.b16 %v827, %v823
    %v876 = vpack.c.b16 %v828, %v824
    %v877 = vpack.c.b16 %v833, %v829
    %v878 = vpack.c.b16 %v834, %v830
    %v879 = vpack.c.b16 %v835, %v831
    %v880 = vpack.c.b16 %v836, %v832
    %v881 = vpack.c.b16 %v841, %v837
    %v882 = vpack.c.b16 %v842, %v838
    %v883 = vpack.c.b16 %v843, %v839
    %v884 = vpack.c.b16 %v844, %v840
    %v885 = vpack.c.b16 %v849, %v845
    %v886 = vpack.c.b16 %v850, %v846
    %v887 = vpack.c.b16 %v851, %v847
    %v888 = vpack.c.b16 %v852, %v848
    %v889 = vpack.c.b16 %v857, %v853
    %v890 = vpack.c.b16 %v858, %v854
    %v891 = vpack.c.b16 %v859, %v855
    %v892 = vpack.c.b16 %v860, %v856
    %925 = vmatprep.subr.bf16.mxu0 %v862
    %926 = vmatpush1.bf16.msra.mxu0 %v861
    %927 = vmatprep.subr.bf16.mxu0 %v866
    %928 = vmatpush1.bf16.msra.mxu0 %v865
    %929 = vmatprep.subr.bf16.mxu0 %v870
    %930 = vmatpush1.bf16.msra.mxu0 %v869
    %931 = vmatprep.subr.bf16.mxu0 %v874
    %932 = vmatpush1.bf16.msra.mxu0 %v873
    %933 = vmatprep.subr.bf16.mxu0 %v878
    %934 = vmatpush1.bf16.msra.mxu0 %v877
    %935 = vmatprep.subr.bf16.mxu0 %v882
    %936 = vmatpush1.bf16.msra.mxu0 %v881
    %937 = vmatprep.subr.bf16.mxu0 %v886
    %938 = vmatpush1.bf16.msra.mxu0 %v885
    %939 = vmatprep.subr.bf16.mxu0 %v890
    %940 = vmatpush1.bf16.msra.mxu0 %v889
    %941 = vmatprep.subr.bf16.mxu0 0
    %942 = vmatpush1.bf16.msra.mxu0 0
    %943 = vmatprep.subr.bf16.mxu0 0
    %944 = vmatpush1.bf16.msra.mxu0 0
    %945 = vmatprep.subr.bf16.mxu0 0
    %946 = vmatpush1.bf16.msra.mxu0 0
    %947 = vmatprep.subr.bf16.mxu0 0
    %948 = vmatpush1.bf16.msra.mxu0 0
    %949 = vmatprep.subr.bf16.mxu0 0
    %950 = vmatpush1.bf16.msra.mxu0 0
    %951 = vmatprep.subr.bf16.mxu0 0
    %952 = vmatpush1.bf16.msra.mxu0 0
    %953 = vmatprep.subr.bf16.mxu0 0
    %954 = vmatpush1.bf16.msra.mxu0 0
    %955 = vmatprep.subr.bf16.mxu0 0
    %956 = vmatpush1.bf16.msra.mxu0 0
    %957 = vmatprep.mubr.bf16.mxu0 0
    %958 = vmatmul.mubr.bf16.gmra.mrb[0].mxu0 0
    %v959 = vpop.f32.mrb[0].mxu0
    %v960 = vadd.f32 0.0, %v959
    %v961 = vpop.f32.mrb[0].mxu0
    %v962 = vadd.f32 0.0, %v961
    %v963 = vpop.f32.mrb[0].mxu0
    %v964 = vpop.f32.mrb[0].mxu0
    %965 = vdwg.mxu0
    %966 = vmatprep.subr.bf16.mxu0 %v864
    %967 = vmatpush1.bf16.msra.mxu0 %v863
    %968 = vmatprep.subr.bf16.mxu0 %v868
    %969 = vmatpush1.bf16.msra.mxu0 %v867
    %970 = vmatprep.subr.bf16.mxu0 %v872
    %971 = vmatpush1.bf16.msra.mxu0 %v871
    %972 = vmatprep.subr.bf16.mxu0 %v876
    %973 = vmatpush1.bf16.msra.mxu0 %v875
    %974 = vmatprep.subr.bf16.mxu0 %v880
    %975 = vmatpush1.bf16.msra.mxu0 %v879
    %976 = vmatprep.subr.bf16.mxu0 %v884
    %977 = vmatpush1.bf16.msra.mxu0 %v883
    %978 = vmatprep.subr.bf16.mxu0 %v888
    %979 = vmatpush1.bf16.msra.mxu0 %v887
    %980 = vmatprep.subr.bf16.mxu0 %v892
    %981 = vmatpush1.bf16.msra.mxu0 %v891
    %982 = vmatprep.subr.bf16.mxu0 0
    %983 = vmatpush1.bf16.msra.mxu0 0
    %984 = vmatprep.subr.bf16.mxu0 0
    %985 = vmatpush1.bf16.msra.mxu0 0
    %986 = vmatprep.subr.bf16.mxu0 0
    %987 = vmatpush1.bf16.msra.mxu0 0
    %988 = vmatprep.subr.bf16.mxu0 0
    %989 = vmatpush1.bf16.msra.mxu0 0
    %990 = vmatprep.subr.bf16.mxu0 0
    %991 = vmatpush1.bf16.msra.mxu0 0
    %992 = vmatprep.subr.bf16.mxu0 0
    %993 = vmatpush1.bf16.msra.mxu0 0
    %994 = vmatprep.subr.bf16.mxu0 0
    %995 = vmatpush1.bf16.msra.mxu0 0
    %996 = vmatprep.subr.bf16.mxu0 0
    %997 = vmatpush1.bf16.msra.mxu0 0
    %998 = vmatprep.mubr.bf16.mxu0 0
    %999 = vmatmul.mubr.bf16.gmra.mrb[0].mxu0 0
    %v1000 = vpop.f32.mrb[0].mxu0
    %v1001 = vadd.f32 0.0, %v1000
    %v1002 = vpop.f32.mrb[0].mxu0
    %v1003 = vadd.f32 0.0, %v1002
    %v1004 = vpop.f32.mrb[0].mxu0
    %v1005 = vpop.f32.mrb[0].mxu0
    %1006 = vdwg.mxu0
    %v1007 = vadd.f32 %v761, %v960
    %v1008 = vadd.f32 %v762, %v962
    %v1009 = vadd.f32 %v763, %v1001
    %v1010 = vadd.f32 %v764, %v1003
    %v1011 = vxor.u32 %v1007, 2147483648
    %v1012 = vmul.f32 %v1011, 1.442695
    %v1013 = vpow.pop %v1012
    %v1014 = vadd.f32 %v1013, 1.0
    %v1015 = vrcp.pop %v1014
    %v1016 = vmul.f32 1.0, %v1015
    %v1017 = vxor.u32 %v1008, 2147483648
    %v1018 = vmul.f32 %v1017, 1.442695
    %v1019 = vpow.pop %v1018
    %v1020 = vadd.f32 %v1019, 1.0
    %v1021 = vrcp.pop %v1020
    %v1022 = vmul.f32 1.0, %v1021
    %v1023 = vtanh.pop %v1009
    %v1024 = vxor.u32 %v1010, 2147483648
    %v1025 = vmul.f32 %v1024, 1.442695
    %v1026 = vpow.pop %v1025
    %v1027 = vadd.f32 %v1026, 1.0
    %v1028 = vrcp.pop %v1027
    %v1029 = vmul.f32 1.0, %v1028
    %v1030 = vmul.f32 %v1022, 0.0
    %v1031 = vmul.f32 %v1016, %v1023
    %v1032 = vadd.f32 %v1030, %v1031
    %v1033 = vtanh.pop %v1032
    %v1034 = vmul.f32 %v1029, %v1033
    %v1035 = vlaneseq
    %v1036 = vshrl.u32 %v1035, 7
    %v1037 = vsub.s32 2, %v1036
    %v1038 = vrot.slane %v649, %v1037
    %v1039 = vlaneseq
    %v1040 = vshrl.u32 %v1039, 7
    %v1041 = vsub.s32 2, %v1040
    %v1042 = vrot.slane %v651, %v1041
    %v1043 = vlaneseq
    %v1044 = vshrl.u32 %v1043, 7
    %v1045 = vsub.s32 2, %v1044
    %v1046 = vrot.slane %v692, %v1045
    %v1047 = vlaneseq
    %v1048 = vshrl.u32 %v1047, 7
    %v1049 = vsub.s32 2, %v1048
    %v1050 = vrot.slane %v694, %v1049
    %v1051 = vlaneseq
    %v1052 = vshrl.u32 %v1051, 7
    %v1053 = vsub.s32 2, %v1052
    %v1054 = vrot.slane %v645, %v1053
    %v1055 = vlaneseq
    %v1056 = vshrl.u32 %v1055, 7
    %v1057 = vsub.s32 2, %v1056
    %v1058 = vrot.slane %v647, %v1057
    %v1059 = vlaneseq
    %v1060 = vshrl.u32 %v1059, 7
    %v1061 = vsub.s32 2, %v1060
    %v1062 = vrot.slane %v688, %v1061
    %v1063 = vlaneseq
    %v1064 = vshrl.u32 %v1063, 7
    %v1065 = vsub.s32 2, %v1064
    %v1066 = vrot.slane %v690, %v1065
    %v1067 = vsel %vm728, %v1038, %v1054
    %v1068 = vsel %vm728, %v1042, %v1058
    %v1069 = vsel %vm728, %v1046, %v1062
    %v1070 = vsel %vm728, %v1050, %v1066
    %v1071 = vpack.c.bf16 %v1034, %v1034
    %1072 = vmatprep.subr.bf16.mxu0 %v862
    %1073 = vmatpush1.bf16.msra.mxu0 %v861
    %1074 = vmatprep.subr.bf16.mxu0 %v866
    %1075 = vmatpush1.bf16.msra.mxu0 %v865
    %1076 = vmatprep.subr.bf16.mxu0 %v870
    %1077 = vmatpush1.bf16.msra.mxu0 %v869
    %1078 = vmatprep.subr.bf16.mxu0 %v874
    %1079 = vmatpush1.bf16.msra.mxu0 %v873
    %1080 = vmatprep.subr.bf16.mxu0 %v878
    %1081 = vmatpush1.bf16.msra.mxu0 %v877
    %1082 = vmatprep.subr.bf16.mxu0 %v882
    %1083 = vmatpush1.bf16.msra.mxu0 %v881
    %1084 = vmatprep.subr.bf16.mxu0 %v886
    %1085 = vmatpush1.bf16.msra.mxu0 %v885
    %1086 = vmatprep.subr.bf16.mxu0 %v890
    %1087 = vmatpush1.bf16.msra.mxu0 %v889
    %1088 = vmatprep.subr.bf16.mxu0 0
    %1089 = vmatpush1.bf16.msra.mxu0 0
    %1090 = vmatprep.subr.bf16.mxu0 0
    %1091 = vmatpush1.bf16.msra.mxu0 0
    %1092 = vmatprep.subr.bf16.mxu0 0
    %1093 = vmatpush1.bf16.msra.mxu0 0
    %1094 = vmatprep.subr.bf16.mxu0 0
    %1095 = vmatpush1.bf16.msra.mxu0 0
    %1096 = vmatprep.subr.bf16.mxu0 0
    %1097 = vmatpush1.bf16.msra.mxu0 0
    %1098 = vmatprep.subr.bf16.mxu0 0
    %1099 = vmatpush1.bf16.msra.mxu0 0
    %1100 = vmatprep.subr.bf16.mxu0 0
    %1101 = vmatpush1.bf16.msra.mxu0 0
    %1102 = vmatprep.subr.bf16.mxu0 0
    %1103 = vmatpush1.bf16.msra.mxu0 0
    %1104 = vmatprep.mubr.bf16.mxu0 0
    %1105 = vmatmul.mubr.bf16.gmra.mrb[0].mxu0 %v1071
    %v1106 = vpop.f32.mrb[0].mxu0
    %v1107 = vadd.f32 0.0, %v1106
    %v1108 = vpop.f32.mrb[0].mxu0
    %v1109 = vadd.f32 0.0, %v1108
    %v1110 = vpop.f32.mrb[0].mxu0
    %v1111 = vpop.f32.mrb[0].mxu0
    %1112 = vdwg.mxu0
    %1113 = vmatprep.subr.bf16.mxu0 %v864
    %1114 = vmatpush1.bf16.msra.mxu0 %v863
    %1115 = vmatprep.subr.bf16.mxu0 %v868
    %1116 = vmatpush1.bf16.msra.mxu0 %v867
    %1117 = vmatprep.subr.bf16.mxu0 %v872
    %1118 = vmatpush1.bf16.msra.mxu0 %v871
    %1119 = vmatprep.subr.bf16.mxu0 %v876
    %1120 = vmatpush1.bf16.msra.mxu0 %v875
    %1121 = vmatprep.subr.bf16.mxu0 %v880
    %1122 = vmatpush1.bf16.msra.mxu0 %v879
    %1123 = vmatprep.subr.bf16.mxu0 %v884
    %1124 = vmatpush1.bf16.msra.mxu0 %v883
    %1125 = vmatprep.subr.bf16.mxu0 %v888
    %1126 = vmatpush1.bf16.msra.mxu0 %v887
    %1127 = vmatprep.subr.bf16.mxu0 %v892
    %1128 = vmatpush1.bf16.msra.mxu0 %v891
    %1129 = vmatprep.subr.bf16.mxu0 0
    %1130 = vmatpush1.bf16.msra.mxu0 0
    %1131 = vmatprep.subr.bf16.mxu0 0
    %1132 = vmatpush1.bf16.msra.mxu0 0
    %1133 = vmatprep.subr.bf16.mxu0 0
    %1134 = vmatpush1.bf16.msra.mxu0 0
    %1135 = vmatprep.subr.bf16.mxu0 0
    %1136 = vmatpush1.bf16.msra.mxu0 0
    %1137 = vmatprep.subr.bf16.mxu0 0
    %1138 = vmatpush1.bf16.msra.mxu0 0
    %1139 = vmatprep.subr.bf16.mxu0 0
    %1140 = vmatpush1.bf16.msra.mxu0 0
    %1141 = vmatprep.subr.bf16.mxu0 0
    %1142 = vmatpush1.bf16.msra.mxu0 0
    %1143 = vmatprep.subr.bf16.mxu0 0
    %1144 = vmatpush1.bf16.msra.mxu0 0
    %1145 = vmatprep.mubr.bf16.mxu0 0
    %1146 = vmatmul.mubr.bf16.gmra.mrb[0].mxu0 %v1071
    %v1147 = vpop.f32.mrb[0].mxu0
    %v1148 = vadd.f32 0.0, %v1147
    %v1149 = vpop.f32.mrb[0].mxu0
    %v1150 = vadd.f32 0.0, %v1149
    %v1151 = vpop.f32.mrb[0].mxu0
    %v1152 = vpop.f32.mrb[0].mxu0
    %1153 = vdwg.mxu0
    %v1154 = vadd.f32 %v1067, %v1107
    %v1155 = vadd.f32 %v1068, %v1109
    %v1156 = vadd.f32 %v1069, %v1148
    %v1157 = vadd.f32 %v1070, %v1150
    %v1158 = vxor.u32 %v1154, 2147483648
    %v1159 = vmul.f32 %v1158, 1.442695
    %v1160 = vpow.pop %v1159
    %v1161 = vadd.f32 %v1160, 1.0
    %v1162 = vrcp.pop %v1161
    %v1163 = vmul.f32 1.0, %v1162
    %v1164 = vxor.u32 %v1155, 2147483648
    %v1165 = vmul.f32 %v1164, 1.442695
    %v1166 = vpow.pop %v1165
    %v1167 = vadd.f32 %v1166, 1.0
    %v1168 = vrcp.pop %v1167
    %v1169 = vmul.f32 1.0, %v1168
    %v1170 = vtanh.pop %v1156
    %v1171 = vxor.u32 %v1157, 2147483648
    %v1172 = vmul.f32 %v1171, 1.442695
    %v1173 = vpow.pop %v1172
    %v1174 = vadd.f32 %v1173, 1.0
    %v1175 = vrcp.pop %v1174
    %v1176 = vmul.f32 1.0, %v1175
    %v1177 = vmul.f32 %v1169, %v1032
    %v1178 = vmul.f32 %v1163, %v1170
    %v1179 = vadd.f32 %v1177, %v1178
    %v1180 = vtanh.pop %v1179
    %v1181 = vmul.f32 %v1176, %v1180
    %v1182 = vlaneseq
    %v1183 = vshrl.u32 %v1182, 7
    %v1184 = vsub.s32 4, %v1183
    %v1185 = vrot.slane %v649, %v1184
    %v1186 = vlaneseq
    %v1187 = vshrl.u32 %v1186, 7
    %v1188 = vsub.s32 4, %v1187
    %v1189 = vrot.slane %v651, %v1188
    %v1190 = vlaneseq
    %v1191 = vshrl.u32 %v1190, 7
    %v1192 = vsub.s32 4, %v1191
    %v1193 = vrot.slane %v692, %v1192
    %v1194 = vlaneseq
    %v1195 = vshrl.u32 %v1194, 7
    %v1196 = vsub.s32 4, %v1195
    %v1197 = vrot.slane %v694, %v1196
    %v1198 = vlaneseq
    %v1199 = vshrl.u32 %v1198, 7
    %v1200 = vsub.s32 4, %v1199
    %v1201 = vrot.slane %v645, %v1200
    %v1202 = vlaneseq
    %v1203 = vshrl.u32 %v1202, 7
    %v1204 = vsub.s32 4, %v1203
    %v1205 = vrot.slane %v647, %v1204
    %v1206 = vlaneseq
    %v1207 = vshrl.u32 %v1206, 7
    %v1208 = vsub.s32 4, %v1207
    %v1209 = vrot.slane %v688, %v1208
    %v1210 = vlaneseq
    %v1211 = vshrl.u32 %v1210, 7
    %v1212 = vsub.s32 4, %v1211
    %v1213 = vrot.slane %v690, %v1212
    %v1214 = vsel %vm728, %v1185, %v1201
    %v1215 = vsel %vm728, %v1189, %v1205
    %v1216 = vsel %vm728, %v1193, %v1209
    %v1217 = vsel %vm728, %v1197, %v1213
    %v1218 = vpack.c.bf16 %v1181, %v1181
    %1219 = vmatprep.subr.bf16.mxu0 %v862
    %1220 = vmatpush1.bf16.msra.mxu0 %v861
    %1221 = vmatprep.subr.bf16.mxu0 %v866
    %1222 = vmatpush1.bf16.msra.mxu0 %v865
    %1223 = vmatprep.subr.bf16.mxu0 %v870
    %1224 = vmatpush1.bf16.msra.mxu0 %v869
    %1225 = vmatprep.subr.bf16.mxu0 %v874
    %1226 = vmatpush1.bf16.msra.mxu0 %v873
    %1227 = vmatprep.subr.bf16.mxu0 %v878
    %1228 = vmatpush1.bf16.msra.mxu0 %v877
    %1229 = vmatprep.subr.bf16.mxu0 %v882
    %1230 = vmatpush1.bf16.msra.mxu0 %v881
    %1231 = vmatprep.subr.bf16.mxu0 %v886
    %1232 = vmatpush1.bf16.msra.mxu0 %v885
    %1233 = vmatprep.subr.bf16.mxu0 %v890
    %1234 = vmatpush1.bf16.msra.mxu0 %v889
    %1235 = vmatprep.subr.bf16.mxu0 0
    %1236 = vmatpush1.bf16.msra.mxu0 0
    %1237 = vmatprep.subr.bf16.mxu0 0
    %1238 = vmatpush1.bf16.msra.mxu0 0
    %1239 = vmatprep.subr.bf16.mxu0 0
    %1240 = vmatpush1.bf16.msra.mxu0 0
    %1241 = vmatprep.subr.bf16.mxu0 0
    %1242 = vmatpush1.bf16.msra.mxu0 0
    %1243 = vmatprep.subr.bf16.mxu0 0
    %1244 = vmatpush1.bf16.msra.mxu0 0
    %1245 = vmatprep.subr.bf16.mxu0 0
    %1246 = vmatpush1.bf16.msra.mxu0 0
    %1247 = vmatprep.subr.bf16.mxu0 0
    %1248 = vmatpush1.bf16.msra.mxu0 0
    %1249 = vmatprep.subr.bf16.mxu0 0
    %1250 = vmatpush1.bf16.msra.mxu0 0
    %1251 = vmatprep.mubr.bf16.mxu0 0
    %1252 = vmatmul.mubr.bf16.gmra.mrb[0].mxu0 %v1218
    %v1253 = vpop.f32.mrb[0].mxu0
    %v1254 = vadd.f32 0.0, %v1253
    %v1255 = vpop.f32.mrb[0].mxu0
    %v1256 = vadd.f32 0.0, %v1255
    %v1257 = vpop.f32.mrb[0].mxu0
    %v1258 = vpop.f32.mrb[0].mxu0
    %1259 = vdwg.mxu0
    %1260 = vmatprep.subr.bf16.mxu0 %v864
    %1261 = vmatpush1.bf16.msra.mxu0 %v863
    %1262 = vmatprep.subr.bf16.mxu0 %v868
    %1263 = vmatpush1.bf16.msra.mxu0 %v867
    %1264 = vmatprep.subr.bf16.mxu0 %v872
    %1265 = vmatpush1.bf16.msra.mxu0 %v871
    %1266 = vmatprep.subr.bf16.mxu0 %v876
    %1267 = vmatpush1.bf16.msra.mxu0 %v875
    %1268 = vmatprep.subr.bf16.mxu0 %v880
    %1269 = vmatpush1.bf16.msra.mxu0 %v879
    %1270 = vmatprep.subr.bf16.mxu0 %v884
    %1271 = vmatpush1.bf16.msra.mxu0 %v883
    %1272 = vmatprep.subr.bf16.mxu0 %v888
    %1273 = vmatpush1.bf16.msra.mxu0 %v887
    %1274 = vmatprep.subr.bf16.mxu0 %v892
    %1275 = vmatpush1.bf16.msra.mxu0 %v891
    %1276 = vmatprep.subr.bf16.mxu0 0
    %1277 = vmatpush1.bf16.msra.mxu0 0
    %1278 = vmatprep.subr.bf16.mxu0 0
    %1279 = vmatpush1.bf16.msra.mxu0 0
    %1280 = vmatprep.subr.bf16.mxu0 0
    %1281 = vmatpush1.bf16.msra.mxu0 0
    %1282 = vmatprep.subr.bf16.mxu0 0
    %1283 = vmatpush1.bf16.msra.mxu0 0
    %1284 = vmatprep.subr.bf16.mxu0 0
    %1285 = vmatpush1.bf16.msra.mxu0 0
    %1286 = vmatprep.subr.bf16.mxu0 0
    %1287 = vmatpush1.bf16.msra.mxu0 0
    %1288 = vmatprep.subr.bf16.mxu0 0
    %1289 = vmatpush1.bf16.msra.mxu0 0
    %1290 = vmatprep.subr.bf16.mxu0 0
    %1291 = vmatpush1.bf16.msra.mxu0 0
    %1292 = vmatprep.mubr.bf16.mxu0 0
    %1293 = vmatmul.mubr.bf16.gmra.mrb[0].mxu0 %v1218
    %v1294 = vpop.f32.mrb[0].mxu0
    %v1295 = vadd.f32 0.0, %v1294
    %v1296 = vpop.f32.mrb[0].mxu0
    %v1297 = vadd.f32 0.0, %v1296
    %v1298 = vpop.f32.mrb[0].mxu0
    %v1299 = vpop.f32.mrb[0].mxu0
    %1300 = vdwg.mxu0
    %v1301 = vadd.f32 %v1214, %v1254
    %v1302 = vadd.f32 %v1215, %v1256
    %v1303 = vadd.f32 %v1216, %v1295
    %v1304 = vadd.f32 %v1217, %v1297
    %v1305 = vxor.u32 %v1301, 2147483648
    %v1306 = vmul.f32 %v1305, 1.442695
    %v1307 = vpow.pop %v1306
    %v1308 = vadd.f32 %v1307, 1.0
    %v1309 = vrcp.pop %v1308
    %v1310 = vmul.f32 1.0, %v1309
    %v1311 = vxor.u32 %v1302, 2147483648
    %v1312 = vmul.f32 %v1311, 1.442695
    %v1313 = vpow.pop %v1312
    %v1314 = vadd.f32 %v1313, 1.0
    %v1315 = vrcp.pop %v1314
    %v1316 = vmul.f32 1.0, %v1315
    %v1317 = vtanh.pop %v1303
    %v1318 = vxor.u32 %v1304, 2147483648
    %v1319 = vmul.f32 %v1318, 1.442695
    %v1320 = vpow.pop %v1319
    %v1321 = vadd.f32 %v1320, 1.0
    %v1322 = vrcp.pop %v1321
    %v1323 = vmul.f32 1.0, %v1322
    %v1324 = vmul.f32 %v1316, %v1179
    %v1325 = vmul.f32 %v1310, %v1317
    %v1326 = vadd.f32 %v1324, %v1325
    %v1327 = vtanh.pop %v1326
    %v1328 = vmul.f32 %v1323, %v1327
    %v1329 = vlaneseq
    %v1330 = vshrl.u32 %v1329, 7
    %v1331 = vsub.s32 6, %v1330
    %v1332 = vrot.slane %v649, %v1331
    %v1333 = vlaneseq
    %v1334 = vshrl.u32 %v1333, 7
    %v1335 = vsub.s32 6, %v1334
    %v1336 = vrot.slane %v651, %v1335
    %v1337 = vlaneseq
    %v1338 = vshrl.u32 %v1337, 7
    %v1339 = vsub.s32 6, %v1338
    %v1340 = vrot.slane %v692, %v1339
    %v1341 = vlaneseq
    %v1342 = vshrl.u32 %v1341, 7
    %v1343 = vsub.s32 6, %v1342
    %v1344 = vrot.slane %v694, %v1343
    %v1345 = vlaneseq
    %v1346 = vshrl.u32 %v1345, 7
    %v1347 = vsub.s32 6, %v1346
    %v1348 = vrot.slane %v645, %v1347
    %v1349 = vlaneseq
    %v1350 = vshrl.u32 %v1349, 7
    %v1351 = vsub.s32 6, %v1350
    %v1352 = vrot.slane %v647, %v1351
    %v1353 = vlaneseq
    %v1354 = vshrl.u32 %v1353, 7
    %v1355 = vsub.s32 6, %v1354
    %v1356 = vrot.slane %v688, %v1355
    %v1357 = vlaneseq
    %v1358 = vshrl.u32 %v1357, 7
    %v1359 = vsub.s32 6, %v1358
    %v1360 = vrot.slane %v690, %v1359
    %v1361 = vsel %vm728, %v1332, %v1348
    %v1362 = vsel %vm728, %v1336, %v1352
    %v1363 = vsel %vm728, %v1340, %v1356
    %v1364 = vsel %vm728, %v1344, %v1360
    %v1365 = vpack.c.bf16 %v1328, %v1328
    %1366 = vmatprep.subr.bf16.mxu0 %v862
    %1367 = vmatpush1.bf16.msra.mxu0 %v861
    %1368 = vmatprep.subr.bf16.mxu0 %v866
    %1369 = vmatpush1.bf16.msra.mxu0 %v865
    %1370 = vmatprep.subr.bf16.mxu0 %v870
    %1371 = vmatpush1.bf16.msra.mxu0 %v869
    %1372 = vmatprep.subr.bf16.mxu0 %v874
    %1373 = vmatpush1.bf16.msra.mxu0 %v873
    %1374 = vmatprep.subr.bf16.mxu0 %v878
    %1375 = vmatpush1.bf16.msra.mxu0 %v877
    %1376 = vmatprep.subr.bf16.mxu0 %v882
    %1377 = vmatpush1.bf16.msra.mxu0 %v881
    %1378 = vmatprep.subr.bf16.mxu0 %v886
    %1379 = vmatpush1.bf16.msra.mxu0 %v885
    %1380 = vmatprep.subr.bf16.mxu0 %v890
    %1381 = vmatpush1.bf16.msra.mxu0 %v889
    %1382 = vmatprep.subr.bf16.mxu0 0
    %1383 = vmatpush1.bf16.msra.mxu0 0
    %1384 = vmatprep.subr.bf16.mxu0 0
    %1385 = vmatpush1.bf16.msra.mxu0 0
    %1386 = vmatprep.subr.bf16.mxu0 0
    %1387 = vmatpush1.bf16.msra.mxu0 0
    %1388 = vmatprep.subr.bf16.mxu0 0
    %1389 = vmatpush1.bf16.msra.mxu0 0
    %1390 = vmatprep.subr.bf16.mxu0 0
    %1391 = vmatpush1.bf16.msra.mxu0 0
    %1392 = vmatprep.subr.bf16.mxu0 0
    %1393 = vmatpush1.bf16.msra.mxu0 0
    %1394 = vmatprep.subr.bf16.mxu0 0
    %1395 = vmatpush1.bf16.msra.mxu0 0
    %1396 = vmatprep.subr.bf16.mxu0 0
    %1397 = vmatpush1.bf16.msra.mxu0 0
    %1398 = vmatprep.mubr.bf16.mxu0 0
    %1399 = vmatmul.mubr.bf16.gmra.mrb[0].mxu0 %v1365
    %v1400 = vpop.f32.mrb[0].mxu0
    %v1401 = vadd.f32 0.0, %v1400
    %v1402 = vpop.f32.mrb[0].mxu0
    %v1403 = vadd.f32 0.0, %v1402
    %v1404 = vpop.f32.mrb[0].mxu0
    %v1405 = vpop.f32.mrb[0].mxu0
    %1406 = vdwg.mxu0
    %1407 = vmatprep.subr.bf16.mxu0 %v864
    %1408 = vmatpush1.bf16.msra.mxu0 %v863
    %1409 = vmatprep.subr.bf16.mxu0 %v868
    %1410 = vmatpush1.bf16.msra.mxu0 %v867
    %1411 = vmatprep.subr.bf16.mxu0 %v872
    %1412 = vmatpush1.bf16.msra.mxu0 %v871
    %1413 = vmatprep.subr.bf16.mxu0 %v876
    %1414 = vmatpush1.bf16.msra.mxu0 %v875
    %1415 = vmatprep.subr.bf16.mxu0 %v880
    %1416 = vmatpush1.bf16.msra.mxu0 %v879
    %1417 = vmatprep.subr.bf16.mxu0 %v884
    %1418 = vmatpush1.bf16.msra.mxu0 %v883
    %1419 = vmatprep.subr.bf16.mxu0 %v888
    %1420 = vmatpush1.bf16.msra.mxu0 %v887
    %1421 = vmatprep.subr.bf16.mxu0 %v892
    %1422 = vmatpush1.bf16.msra.mxu0 %v891
    %1423 = vmatprep.subr.bf16.mxu0 0
    %1424 = vmatpush1.bf16.msra.mxu0 0
    %1425 = vmatprep.subr.bf16.mxu0 0
    %1426 = vmatpush1.bf16.msra.mxu0 0
    %1427 = vmatprep.subr.bf16.mxu0 0
    %1428 = vmatpush1.bf16.msra.mxu0 0
    %1429 = vmatprep.subr.bf16.mxu0 0
    %1430 = vmatpush1.bf16.msra.mxu0 0
    %1431 = vmatprep.subr.bf16.mxu0 0
    %1432 = vmatpush1.bf16.msra.mxu0 0
    %1433 = vmatprep.subr.bf16.mxu0 0
    %1434 = vmatpush1.bf16.msra.mxu0 0
    %1435 = vmatprep.subr.bf16.mxu0 0
    %1436 = vmatpush1.bf16.msra.mxu0 0
    %1437 = vmatprep.subr.bf16.mxu0 0
    %1438 = vmatpush1.bf16.msra.mxu0 0
    %1439 = vmatprep.mubr.bf16.mxu0 0
    %1440 = vmatmul.mubr.bf16.gmra.mrb[0].mxu0 %v1365
    %v1441 = vpop.f32.mrb[0].mxu0
    %v1442 = vadd.f32 0.0, %v1441
    %v1443 = vpop.f32.mrb[0].mxu0
    %v1444 = vadd.f32 0.0, %v1443
    %v1445 = vpop.f32.mrb[0].mxu0
    %v1446 = vpop.f32.mrb[0].mxu0
    %1447 = vdwg.mxu0
    %v1448 = vadd.f32 %v1361, %v1401
    %v1449 = vadd.f32 %v1362, %v1403
    %v1450 = vadd.f32 %v1363, %v1442
    %v1451 = vadd.f32 %v1364, %v1444
    %v1452 = vxor.u32 %v1448, 2147483648
    %v1453 = vmul.f32 %v1452, 1.442695
    %v1454 = vpow.pop %v1453
    %v1455 = vadd.f32 %v1454, 1.0
    %v1456 = vrcp.pop %v1455
    %v1457 = vmul.f32 1.0, %v1456
    %v1458 = vxor.u32 %v1449, 2147483648
    %v1459 = vmul.f32 %v1458, 1.442695
    %v1460 = vpow.pop %v1459
    %v1461 = vadd.f32 %v1460, 1.0
    %v1462 = vrcp.pop %v1461
    %v1463 = vmul.f32 1.0, %v1462
    %v1464 = vtanh.pop %v1450
    %v1465 = vxor.u32 %v1451, 2147483648
    %v1466 = vmul.f32 %v1465, 1.442695
    %v1467 = vpow.pop %v1466
    %v1468 = vadd.f32 %v1467, 1.0
    %v1469 = vrcp.pop %v1468
    %v1470 = vmul.f32 1.0, %v1469
    %v1471 = vmul.f32 %v1463, %v1326
    %v1472 = vmul.f32 %v1457, %v1464
    %v1473 = vadd.f32 %v1471, %v1472
    %v1474 = vtanh.pop %v1473
    %v1475 = vmul.f32 %v1470, %v1474
    %1476 = vst [vmem:[#allocation4] sm:$0x3] %v1475
    %1477 = vst [vmem:[#allocation6] sm:$0x3] %v1473
    %v1478 = vpack.c.bf16 %v1475, %v1475
    %v1479 = vld [vmem:[%s6] sm:$0xf]
    %v1480 = vld [vmem:[%s6 + $0x4] sm:$0xf]
    %v1481 = vld [vmem:[%s6 + $0x8] sm:$0xf]
    %v1482 = vld [vmem:[%s6 + $0xc] sm:$0xf]
    %v1483 = vld [vmem:[%s6 + $0x10] sm:$0xf]
    %v1484 = vld [vmem:[%s6 + $0x14] sm:$0xf]
    %v1485 = vld [vmem:[%s6 + $0x18] sm:$0xf]
    %v1486 = vld [vmem:[%s6 + $0x1c] sm:$0xf]
    %v1487 = vld [vmem:[%s6 + $0x20] sm:$0xf]
    %v1488 = vld [vmem:[%s6 + $0x24] sm:$0xf]
    %v1489 = vld [vmem:[%s6 + $0x28] sm:$0xf]
    %v1490 = vld [vmem:[%s6 + $0x2c] sm:$0xf]
    %v1491 = vld [vmem:[%s6 + $0x30] sm:$0xf]
    %v1492 = vld [vmem:[%s6 + $0x34] sm:$0xf]
    %v1493 = vld [vmem:[%s6 + $0x38] sm:$0xf]
    %v1494 = vld [vmem:[%s6 + $0x3c] sm:$0xf]
    %v1495 = vld [vmem:[%s7] sm:$0x1]
    %v1497 = vlaneseq
    %v1498 = vshrl.u32 %v1497, 7
    %v1499 = vsub.s32 0, %v1498
    %v1500 = vrot.slane %v1495, %v1499
    %v1518 = vunpack.c.l.b16 %v1479
    %v1519 = vunpack.c.l.b16 %v1480
    %v1520 = vunpack.c.l.b16 %v1481
    %v1521 = vunpack.c.l.b16 %v1482
    %v1522 = vunpack.c.l.b16 %v1483
    %v1523 = vunpack.c.l.b16 %v1484
    %v1524 = vunpack.c.l.b16 %v1485
    %v1525 = vunpack.c.l.b16 %v1486
    %v1526 = vunpack.c.l.b16 %v1487
    %v1527 = vunpack.c.l.b16 %v1488
    %v1528 = vunpack.c.l.b16 %v1489
    %v1529 = vunpack.c.l.b16 %v1490
    %v1530 = vunpack.c.l.b16 %v1491
    %v1531 = vunpack.c.l.b16 %v1492
    %v1532 = vunpack.c.l.b16 %v1493
    %v1533 = vunpack.c.l.b16 %v1494
    %v1534 = vpack.c.b16 %v1519, %v1518
    %v1535 = vpack.c.b16 %v1521, %v1520
    %v1536 = vpack.c.b16 %v1523, %v1522
    %v1537 = vpack.c.b16 %v1525, %v1524
    %v1538 = vpack.c.b16 %v1527, %v1526
    %v1539 = vpack.c.b16 %v1529, %v1528
    %v1540 = vpack.c.b16 %v1531, %v1530
    %v1541 = vpack.c.b16 %v1533, %v1532
    %1550 = vmatprep.subr.bf16.mxu0 0
    %1551 = vmatpush1.bf16.msra.mxu0 %v1534
    %1552 = vmatprep.subr.bf16.mxu0 0
    %1553 = vmatpush1.bf16.msra.mxu0 %v1535
    %1554 = vmatprep.subr.bf16.mxu0 0
    %1555 = vmatpush1.bf16.msra.mxu0 %v1536
    %1556 = vmatprep.subr.bf16.mxu0 0
    %1557 = vmatpush1.bf16.msra.mxu0 %v1537
    %1558 = vmatprep.subr.bf16.mxu0 0
    %1559 = vmatpush1.bf16.msra.mxu0 %v1538
    %1560 = vmatprep.subr.bf16.mxu0 0
    %1561 = vmatpush1.bf16.msra.mxu0 %v1539
    %1562 = vmatprep.subr.bf16.mxu0 0
    %1563 = vmatpush1.bf16.msra.mxu0 %v1540
    %1564 = vmatprep.subr.bf16.mxu0 0
    %1565 = vmatpush1.bf16.msra.mxu0 %v1541
    %1566 = vmatprep.subr.bf16.mxu0 0
    %1567 = vmatpush1.bf16.msra.mxu0 0
    %1568 = vmatprep.subr.bf16.mxu0 0
    %1569 = vmatpush1.bf16.msra.mxu0 0
    %1570 = vmatprep.subr.bf16.mxu0 0
    %1571 = vmatpush1.bf16.msra.mxu0 0
    %1572 = vmatprep.subr.bf16.mxu0 0
    %1573 = vmatpush1.bf16.msra.mxu0 0
    %1574 = vmatprep.subr.bf16.mxu0 0
    %1575 = vmatpush1.bf16.msra.mxu0 0
    %1576 = vmatprep.subr.bf16.mxu0 0
    %1577 = vmatpush1.bf16.msra.mxu0 0
    %1578 = vmatprep.subr.bf16.mxu0 0
    %1579 = vmatpush1.bf16.msra.mxu0 0
    %1580 = vmatprep.subr.bf16.mxu0 0
    %1581 = vmatpush1.bf16.msra.mxu0 0
    %1582 = vmatprep.mubr.bf16.mxu0 0
    %1583 = vmatmul.mubr.bf16.gmra.mrb[0].mxu0 %v1478
    %v1584 = vpop.f32.mrb[0].mxu0
    %v1585 = vadd.f32 %v1500, %v1584
    %v1586 = vpop.f32.mrb[0].mxu0
    %v1587 = vpop.f32.mrb[0].mxu0
    %v1588 = vpop.f32.mrb[0].mxu0
    %1589 = vdwg.mxu0
    %vm1590 = vcmask 254976
    %1591 = vst.msk [vmem:[#allocation2] sm:$0x3] %vm1590, %v1585
    // Predicated region
    $region34: #{cnn_lstm_forward.1} parent=1 // pred_check
      _
    $region35: #{cnn_lstm_forward.1} parent=1 // pred_check_branch
      %1593 = sbr.rel (0) target = $region37
    $region36: #{cnn_lstm_forward.1} parent=1 // pred_region
      %s1595 = ssub.s32 32, 32
      %1596 = vsyncadd [#allocation3], %s1595
      %s1598 = sshll.u32 [#allocation2], 4
      %s1599 = int_to_ptr.vmem [resolvable:$true] %s1598
      %1601 = dma.vmem_to_hbm [thread:$0]  %s1599, 32, %s8, [#allocation3]
    $region37: #{cnn_lstm_forward.1} parent=1 // pred_fallthru
      _
    // Predicated region
    $region38: #{cnn_lstm_forward.1} parent=1 // pred_check
      _
    $region39: #{cnn_lstm_forward.1} parent=1 // pred_check_branch
      %1603 = sbr.rel (0) target = $region41
    $region40: #{cnn_lstm_forward.1} parent=1 // pred_region
      %s1605 = ssub.s32 32, 32
      %1606 = vsyncadd [#allocation5], %s1605
      %s1608 = sshll.u32 [#allocation4], 4
      %s1609 = int_to_ptr.vmem [resolvable:$true] %s1608
      %1611 = dma.vmem_to_hbm [thread:$0]  %s1609, 32, %s9, [#allocation5]
    $region41: #{cnn_lstm_forward.1} parent=1 // pred_fallthru
      _
    // Predicated region
    $region42: #{cnn_lstm_forward.1} parent=1 // pred_check
      _
    $region43: #{cnn_lstm_forward.1} parent=1 // pred_check_branch
      %1613 = sbr.rel (0) target = $region45
    $region44: #{cnn_lstm_forward.1} parent=1 // pred_region
      %s1615 = ssub.s32 32, 32
      %1616 = vsyncadd [#allocation5], %s1615
      %s1618 = sshll.u32 [#allocation6], 4
      %s1619 = int_to_ptr.vmem [resolvable:$true] %s1618
      %1621 = dma.vmem_to_hbm [thread:$0]  %s1619, 32, %s10, [#allocation5]
    $region45: #{cnn_lstm_forward.1} parent=1 // pred_fallthru
      _
    // Predicated region
    $region46: #{cnn_lstm_forward.1} parent=1 // pred_check
      _
    $region47: #{cnn_lstm_forward.1} parent=1 // pred_check_branch
      %1623 = sbr.rel (0) target = $region49
    $region48: #{cnn_lstm_forward.1} parent=1 // pred_region
      %1624 = dma.done [#allocation3], 32
    $region49: #{cnn_lstm_forward.1} parent=1 // pred_fallthru
      _
    // Predicated region
    $region50: #{cnn_lstm_forward.1} parent=1 // pred_check
      _
    $region51: #{cnn_lstm_forward.1} parent=1 // pred_check_branch
      %1626 = sbr.rel (0) target = $region53
    $region52: #{cnn_lstm_forward.1} parent=1 // pred_region
      %1627 = dma.done [#allocation5], 32
    $region53: #{cnn_lstm_forward.1} parent=1 // pred_fallthru
      _
    // Predicated region
    $region54: #{cnn_lstm_forward.1} parent=1 // pred_check
      _
    $region55: #{cnn_lstm_forward.1} parent=1 // pred_check_branch
      %1629 = sbr.rel (0) target = $region57
    $region56: #{cnn_lstm_forward.1} parent=1 // pred_region
      %1630 = dma.done [#allocation5], 32
    $region57: #{cnn_lstm_forward.1} parent=1 // pred_fallthru
      _
    %1631 = vsyncpa [#allocation3], 1
    %1632 = vsyncpa [#allocation5], 1

</llo_original>
